<compile_context>
chip_gen: v7x
topology: tpu7x:2x2x1
jax: 0.10.0
libtpu: 0.0.40
codegen_flags: <defaults>
</compile_context>

<pallas_src>
import functools
import math

import jax
import jax.numpy as jnp
from jax.experimental import pallas as pl
from jax.experimental.pallas import tpu as pltpu


def _layernorm(x, gamma, beta, eps=1e-5):
    mu = jnp.mean(x, axis=-1, keepdims=True)
    xc = x - mu
    var = jnp.mean(xc * xc, axis=-1, keepdims=True)
    return xc * jax.lax.rsqrt(var + eps) * gamma + beta


def _fused_layer_kernel(
    src_ref, embed_w_ref, embed_b_ref,
    wqkv_ref, bqkv_ref, wo_ref, bo_ref,
    ln1g_ref, ln1b_ref, w1_ref, b1_ref, w2_ref, b2_ref,
    ln2g_ref, ln2b_ref, out_w_ref, out_b_ref,
    o_ref,
    x_ref, ctx_ref,
    *, nhead, head_dim,
):
    layer = pl.program_id(1)
    d_model = nhead * head_dim

    # -------- layer 0: joint embedding into the resident activation --------
    @pl.when(layer == 0)
    def _():
        x_ref[...] = (
            jnp.dot(src_ref[...], embed_w_ref[...],
                    preferred_element_type=jnp.float32)
            + embed_b_ref[...]
        )

    x = x_ref[...]                                         # (T, D) f32

    # -------- self-attention ------------------------------------------------
    # Fused QKV projection: one full-depth (T, D) @ (D, 3D) matmul.
    # (attention scale is folded into the Q columns of wqkv at init time)
    qkv = (
        jnp.dot(x.astype(jnp.bfloat16), wqkv_ref[...],
                preferred_element_type=jnp.float32)
        + bqkv_ref[...]
    ).astype(jnp.bfloat16)                                 # (T, 3D)

    # Head split done ONCE per step on tiny (T, hd) tiles: static lane slices
    # + leading-axis stack (a lane-splitting reshape is avoided on purpose).
    def split_heads(base):
        return jnp.stack(
            [qkv[:, base + h * head_dim: base + (h + 1) * head_dim]
             for h in range(nhead)], axis=0)               # (H, T, hd) bf16

    qh = split_heads(0)
    kh = split_heads(d_model)
    vh = split_heads(2 * d_model)

    # Batched over all heads: two einsums, no per-head matmul loop.
    s = jnp.einsum('htd,hsd->hts', qh, kh,
                   preferred_element_type=jnp.float32)     # (H, T, T)
    s = s - jnp.max(s, axis=-1, keepdims=True)
    p = jnp.exp(s)
    denom = jnp.sum(p, axis=-1, keepdims=True)             # (H, T, 1)
    ctx = jnp.einsum('hts,hsd->htd', p.astype(jnp.bfloat16), vh,
                     preferred_element_type=jnp.float32)   # (H, T, hd)
    # Deferred softmax normalisation: scale the (H, T, hd) context once via
    # the EUP reciprocal instead of dividing the (H, T, T) matrix.
    ctx = ctx * pl.reciprocal(denom, approx=True)

    # Reassemble heads onto lanes through a tiny VMEM tile so the output
    # projection is a single K = d_model matmul (full MXU contraction depth).
    for h in range(nhead):
        ctx_ref[:, h * head_dim:(h + 1) * head_dim] = ctx[h]
    attn = (
        jnp.dot(ctx_ref[...].astype(jnp.bfloat16), wo_ref[...],
                preferred_element_type=jnp.float32)
        + bo_ref[...]
    )

    # -------- residual + LN1, feed-forward (ReLU), residual + LN2 -----------
    y = _layernorm(x + attn, ln1g_ref[...], ln1b_ref[...])

    h1 = jnp.maximum(
        jnp.dot(y.astype(jnp.bfloat16), w1_ref[...],
                preferred_element_type=jnp.float32) + b1_ref[...],
        0.0)
    h2 = (
        jnp.dot(h1.astype(jnp.bfloat16), w2_ref[...],
                preferred_element_type=jnp.float32)
        + b2_ref[...]
    )
    x_new = _layernorm(y + h2, ln2g_ref[...], ln2b_ref[...])
    x_ref[...] = x_new

    # -------- last layer: lane-dense (padded to 128) output projection ------
    @pl.when(layer == pl.num_programs(1) - 1)
    def _():
        o_ref[...] = (
            jnp.dot(x_new.astype(jnp.bfloat16), out_w_ref[...],
                    preferred_element_type=jnp.float32)
            + out_b_ref[...]
        )


# -----------------------------------------------------------------------------
# Deterministic synthetic parameter initialization (not a checkpoint load).
# -----------------------------------------------------------------------------
def init_params(key, num_joints, joint_dim, embedding_dim, num_layers,
                dim_ff, nhead):
    d_model = embedding_dim * num_joints
    head_dim = d_model // nhead
    in_dim = num_joints * joint_dim
    in_pad = ((in_dim + 127) // 128) * 128       # lane-dense input width
    out_dim = in_dim
    out_pad = ((out_dim + 127) // 128) * 128     # lane-dense output width

    keys = jax.random.split(key, 3)

    def lin(k, fan_in, shape):
        return jax.random.normal(k, shape, jnp.float32) / math.sqrt(fan_in)

    # Per-joint linear embedding -> exact block-diagonal weight, rows padded
    # to in_pad so the input DMA / first matmul are unmasked K=128.
    kje_w, kje_b = jax.random.split(keys[0])
    wj = lin(kje_w, joint_dim, (num_joints, joint_dim, embedding_dim))
    bj = lin(kje_b, joint_dim, (num_joints, embedding_dim)) * 0.1
    embed_w = jnp.zeros((in_pad, d_model), jnp.float32)
    for j in range(num_joints):
        embed_w = embed_w.at[
            j * joint_dim:(j + 1) * joint_dim,
            j * embedding_dim:(j + 1) * embedding_dim,
        ].set(wj[j])
    embed_b = bj.reshape(1, d_model)

    kq, ko, k1, k1b, k2, k2b = jax.random.split(keys[1], 6)
    scale = 1.0 / math.sqrt(head_dim)

    wqkv = lin(kq, d_model, (num_layers, d_model, 3 * d_model))
    # Fold the 1/sqrt(head_dim) attention scale into the Q block (Q bias is
    # zero here; a nonzero checkpoint Q bias must be scaled too).
    wqkv = wqkv.at[:, :, :d_model].multiply(scale)
    bqkv = jnp.zeros((num_layers, 1, 3 * d_model), jnp.float32)

    wo = lin(ko, d_model, (num_layers, d_model, d_model))
    bo = jnp.zeros((num_layers, 1, d_model), jnp.float32)

    ln1g = jnp.ones((num_layers, 1, d_model), jnp.float32)
    ln1b = jnp.zeros((num_layers, 1, d_model), jnp.float32)

    w1 = lin(k1, d_model, (num_layers, d_model, dim_ff))
    b1 = lin(k1b, d_model, (num_layers, 1, dim_ff)) * 0.1
    w2 = lin(k2, dim_ff, (num_layers, dim_ff, d_model))
    b2 = lin(k2b, dim_ff, (num_layers, 1, d_model)) * 0.1

    ln2g = jnp.ones((num_layers, 1, d_model), jnp.float32)
    ln2b = jnp.zeros((num_layers, 1, d_model), jnp.float32)

    ow = lin(keys[2], d_model, (d_model, out_dim))
    out_w = jnp.zeros((d_model, out_pad), jnp.float32).at[:, :out_dim].set(ow)
    out_b = jnp.zeros((1, out_pad), jnp.float32)

    return dict(
        embed_w=embed_w, embed_b=embed_b,                  # f32 (tiny)
        wqkv=wqkv.astype(jnp.bfloat16), bqkv=bqkv,
        wo=wo.astype(jnp.bfloat16), bo=bo,
        ln1g=ln1g, ln1b=ln1b,
        w1=w1.astype(jnp.bfloat16), b1=b1,
        w2=w2.astype(jnp.bfloat16), b2=b2,
        ln2g=ln2g, ln2b=ln2b,
        out_w=out_w.astype(jnp.bfloat16), out_b=out_b,
    )


# -----------------------------------------------------------------------------
# Full forward pass: one pallas_call, grid = (batch [parallel], layers [arb]).
# -----------------------------------------------------------------------------
def bidirectional_transformer_forward(src, params, *, num_joints, joint_dim,
                                      embedding_dim, nhead):
    b, t, nm = src.shape
    if nm != num_joints * joint_dim:
        raise ValueError("Invalid data type: expected (B, T, N*M) format")
    d_model = embedding_dim * num_joints
    head_dim = d_model // nhead
    num_layers = params["wqkv"].shape[0]
    dim_ff = params["w1"].shape[-1]
    in_pad = params["embed_w"].shape[0]
    out_pad = params["out_w"].shape[1]

    # Lane-dense input: zero-pad the feature dim to a multiple of 128.
    src_p = jnp.zeros((b, t, in_pad), src.dtype).at[:, :, :nm].set(src)

    kernel = functools.partial(_fused_layer_kernel,
                               nhead=nhead, head_dim=head_dim)

    def stream(arr):   # per-layer stacked params, streamed along the L axis
        return pl.BlockSpec((None,) + arr.shape[1:], lambda bi, li: (li, 0, 0))

    def const(arr):    # layer- and batch-invariant 2-D params
        return pl.BlockSpec(arr.shape, lambda bi, li: (0, 0))

    in_arrays = (
        src_p,
        params["embed_w"], params["embed_b"],
        params["wqkv"], params["bqkv"], params["wo"], params["bo"],
        params["ln1g"], params["ln1b"],
        params["w1"], params["b1"], params["w2"], params["b2"],
        params["ln2g"], params["ln2b"],
        params["out_w"], params["out_b"],
    )
    in_specs = [
        pl.BlockSpec((None, t, in_pad), lambda bi, li: (bi, 0, 0)),
        const(params["embed_w"]), const(params["embed_b"]),
        stream(params["wqkv"]), stream(params["bqkv"]),
        stream(params["wo"]), stream(params["bo"]),
        stream(params["ln1g"]), stream(params["ln1b"]),
        stream(params["w1"]), stream(params["b1"]),
        stream(params["w2"]), stream(params["b2"]),
        stream(params["ln2g"]), stream(params["ln2b"]),
        const(params["out_w"]), const(params["out_b"]),
    ]

    # Advisory cost estimate for the XLA scheduler.
    per_layer_flops = (2 * t * d_model * 3 * d_model        # QKV
                       + 4 * t * t * d_model                # QK^T + P@V
                       + 2 * t * d_model * d_model          # out proj
                       + 4 * t * d_model * dim_ff)          # FFN
    flops = b * (2 * t * in_pad * d_model
                 + num_layers * per_layer_flops
                 + 2 * t * d_model * out_pad)
    transcendentals = b * num_layers * (nhead * t * t + nhead * t)
    streamed_keys = ("wqkv", "bqkv", "wo", "bo", "ln1g", "ln1b",
                     "w1", "b1", "w2", "b2", "ln2g", "ln2b")
    const_keys = ("embed_w", "embed_b", "out_w", "out_b")

    def nbytes(a):
        return int(a.size) * a.dtype.itemsize

    bytes_accessed = (nbytes(src_p) + b * t * out_pad * 4
                      + b * sum(nbytes(params[k]) for k in streamed_keys)
                      + sum(nbytes(params[k]) for k in const_keys))

    out = pl.pallas_call(
        kernel,
        out_shape=jax.ShapeDtypeStruct((b, t, out_pad), jnp.float32),
        grid=(b, num_layers),
        in_specs=in_specs,
        out_specs=pl.BlockSpec((None, t, out_pad), lambda bi, li: (bi, 0, 0)),
        scratch_shapes=[
            pltpu.VMEM((t, d_model), jnp.float32),   # resident activation
            pltpu.VMEM((t, d_model), jnp.float32),   # head reassembly tile
        ],
        compiler_params=pltpu.CompilerParams(
            dimension_semantics=("parallel", "arbitrary"),
            vmem_limit_bytes=64 * 1024 * 1024),
        cost_estimate=pl.CostEstimate(
            flops=int(flops),
            transcendentals=int(transcendentals),
            bytes_accessed=int(bytes_accessed)),
    )(*in_arrays)

    return out[:, :, :nm].reshape(b, t, nm)


if __name__ == "__main__":
    # Small shapes consistent with the module (d_model must divide by nhead).
    B, T = 2, 8
    num_joints, joint_dim = 4, 3              # N, M -> input dim N*M = 12
    embedding_dim = 32                        # d_model = 32 * 4 = 128
    nhead = 4                                 # head_dim = 32
    num_encoder_layers = 2
    dim_feedforward = 256

    key = jax.random.PRNGKey(0)
    kx, kp = jax.random.split(key)
    src = jax.random.normal(kx, (B, T, num_joints * joint_dim), jnp.float32)
    params = init_params(kp, num_joints, joint_dim, embedding_dim,
                         num_encoder_layers, dim_feedforward, nhead)

    out = bidirectional_transformer_forward(
        src, params,
        num_joints=num_joints, joint_dim=joint_dim,
        embedding_dim=embedding_dim, nhead=nhead,
    )
    out = jax.block_until_ready(out)
    assert out.shape == (B, T, num_joints * joint_dim)
    assert bool(jnp.all(jnp.isfinite(out)))
    print("KERNEL_OK")
</pallas_src>

<mosaic_0001>
module attributes {stable_mosaic.version = 11 : i64} {
  func.func @_fused_layer_kernel(%arg0: i32, %arg1: i32, %arg2: memref<1x8x128xf32, #tpu.memory_space<vmem>>, %arg3: memref<128x128xf32, #tpu.memory_space<vmem>>, %arg4: memref<1x128xf32, #tpu.memory_space<vmem>>, %arg5: memref<1x128x384xbf16, #tpu.memory_space<vmem>>, %arg6: memref<1x1x384xf32, #tpu.memory_space<vmem>>, %arg7: memref<1x128x128xbf16, #tpu.memory_space<vmem>>, %arg8: memref<1x1x128xf32, #tpu.memory_space<vmem>>, %arg9: memref<1x1x128xf32, #tpu.memory_space<vmem>>, %arg10: memref<1x1x128xf32, #tpu.memory_space<vmem>>, %arg11: memref<1x128x256xbf16, #tpu.memory_space<vmem>>, %arg12: memref<1x1x256xf32, #tpu.memory_space<vmem>>, %arg13: memref<1x256x128xbf16, #tpu.memory_space<vmem>>, %arg14: memref<1x1x128xf32, #tpu.memory_space<vmem>>, %arg15: memref<1x1x128xf32, #tpu.memory_space<vmem>>, %arg16: memref<1x1x128xf32, #tpu.memory_space<vmem>>, %arg17: memref<128x128xbf16, #tpu.memory_space<vmem>>, %arg18: memref<1x128xf32, #tpu.memory_space<vmem>>, %arg19: memref<1x8x128xf32, #tpu.memory_space<vmem>>, %arg20: memref<8x128xf32, #tpu.memory_space<vmem>>, %arg21: memref<8x128xf32, #tpu.memory_space<vmem>>) attributes {dimension_semantics = [#tpu.dimension_semantics<parallel>, #tpu.dimension_semantics<arbitrary>], iteration_bounds = array<i64: 2, 2>, scalar_prefetch = 0 : i64, scratch_operands = 2 : i64, tpu.core_type = #tpu.core_type<tc>, window_params = [{transform_indices = @transform_0, window_bounds = array<i64: 1, 8, 128>}, {pipeline_mode = #tpu.pipeline_mode<synchronous>, transform_indices = @transform_1, window_bounds = array<i64: 128, 128>}, {pipeline_mode = #tpu.pipeline_mode<synchronous>, transform_indices = @transform_2, window_bounds = array<i64: 1, 128>}, {transform_indices = @transform_3, window_bounds = array<i64: 1, 128, 384>}, {transform_indices = @transform_4, window_bounds = array<i64: 1, 1, 384>}, {transform_indices = @transform_5, window_bounds = array<i64: 1, 128, 128>}, {transform_indices = @transform_6, window_bounds = array<i64: 1, 1, 128>}, {transform_indices = @transform_7, window_bounds = array<i64: 1, 1, 128>}, {transform_indices = @transform_8, window_bounds = array<i64: 1, 1, 128>}, {transform_indices = @transform_9, window_bounds = array<i64: 1, 128, 256>}, {transform_indices = @transform_10, window_bounds = array<i64: 1, 1, 256>}, {transform_indices = @transform_11, window_bounds = array<i64: 1, 256, 128>}, {transform_indices = @transform_12, window_bounds = array<i64: 1, 1, 128>}, {transform_indices = @transform_13, window_bounds = array<i64: 1, 1, 128>}, {transform_indices = @transform_14, window_bounds = array<i64: 1, 1, 128>}, {pipeline_mode = #tpu.pipeline_mode<synchronous>, transform_indices = @transform_15, window_bounds = array<i64: 128, 128>}, {pipeline_mode = #tpu.pipeline_mode<synchronous>, transform_indices = @transform_16, window_bounds = array<i64: 1, 128>}, {transform_indices = @transform_17, window_bounds = array<i64: 1, 8, 128>}]} {
    %c0_i32 = arith.constant 0 : i32
    %0 = arith.cmpi eq, %arg1, %c0_i32 : i32
    %1 = arith.extui %0 : i1 to i32
    %c0_i32_0 = arith.constant 0 : i32
    %2 = arith.cmpi ne, %1, %c0_i32_0 : i32
    scf.if %2 {
      %c0_66 = arith.constant 0 : index
      %c0_67 = arith.constant 0 : index
      %c0_68 = arith.constant 0 : index
      %146 = vector.load %arg2[%c0_66, %c0_67, %c0_68] : memref<1x8x128xf32, #tpu.memory_space<vmem>>, vector<1x8x128xf32>
      %147 = vector.shape_cast %146 : vector<1x8x128xf32> to vector<8x128xf32>
      %c0_69 = arith.constant 0 : index
      %c0_70 = arith.constant 0 : index
      %148 = vector.load %arg3[%c0_69, %c0_70] : memref<128x128xf32, #tpu.memory_space<vmem>>, vector<128x128xf32>
      %cst_71 = arith.constant dense<0.000000e+00> : vector<8x128xf32>
      %149 = tpu.matmul %147, %148, %cst_71 {dimension_numbers = #tpu.dot_dimension_numbers<[1], [0], [0], [1], [0, 0, 1, 1], [], []>} : vector<8x128xf32>, vector<128x128xf32>, vector<8x128xf32> -> vector<8x128xf32>
      %c0_72 = arith.constant 0 : index
      %c0_73 = arith.constant 0 : index
      %150 = vector.load %arg4[%c0_72, %c0_73] : memref<1x128xf32, #tpu.memory_space<vmem>>, vector<1x128xf32>
      %151 = vector.broadcast %150 : vector<1x128xf32> to vector<8x128xf32>
      %152 = arith.addf %149, %151 : vector<8x128xf32>
      %c0_74 = arith.constant 0 : index
      %c0_75 = arith.constant 0 : index
      %153 = vector.load %arg20[%c0_74, %c0_75] : memref<8x128xf32, #tpu.memory_space<vmem>>, vector<8x128xf32>
      tpu.vector_store %arg20[%c0_74, %c0_75], %152 {strides = array<i32>} : memref<8x128xf32, #tpu.memory_space<vmem>>, vector<8x128xf32>,
    } else {
    }
    %c0 = arith.constant 0 : index
    %c0_1 = arith.constant 0 : index
    %3 = vector.load %arg20[%c0, %c0_1] : memref<8x128xf32, #tpu.memory_space<vmem>>, vector<8x128xf32>
    %4 = arith.truncf %3 : vector<8x128xf32> to vector<8x128xbf16>
    %c0_2 = arith.constant 0 : index
    %c0_3 = arith.constant 0 : index
    %c0_4 = arith.constant 0 : index
    %5 = vector.load %arg5[%c0_2, %c0_3, %c0_4] : memref<1x128x384xbf16, #tpu.memory_space<vmem>>, vector<1x128x384xbf16>
    %6 = vector.shape_cast %5 : vector<1x128x384xbf16> to vector<128x384xbf16>
    %cst = arith.constant dense<0.000000e+00> : vector<8x384xf32>
    %7 = tpu.matmul %4, %6, %cst {dimension_numbers = #tpu.dot_dimension_numbers<[1], [0], [0], [1], [0, 0, 1, 1], [], []>} : vector<8x128xbf16>, vector<128x384xbf16>, vector<8x384xf32> -> vector<8x384xf32>
    %c0_5 = arith.constant 0 : index
    %c0_6 = arith.constant 0 : index
    %c0_7 = arith.constant 0 : index
    %8 = vector.load %arg6[%c0_5, %c0_6, %c0_7] : memref<1x1x384xf32, #tpu.memory_space<vmem>>, vector<1x1x384xf32>
    %9 = vector.shape_cast %8 : vector<1x1x384xf32> to vector<1x384xf32>
    %10 = vector.broadcast %9 : vector<1x384xf32> to vector<8x384xf32>
    %11 = arith.addf %7, %10 : vector<8x384xf32>
    %12 = arith.truncf %11 : vector<8x384xf32> to vector<8x384xbf16>
    %13 = vector.extract_strided_slice %12 {offsets = [0, 0], sizes = [8, 32], strides = [1, 1]} : vector<8x384xbf16> to vector<8x32xbf16>
    %14 = vector.extract_strided_slice %12 {offsets = [0, 32], sizes = [8, 32], strides = [1, 1]} : vector<8x384xbf16> to vector<8x32xbf16>
    %15 = vector.extract_strided_slice %12 {offsets = [0, 64], sizes = [8, 32], strides = [1, 1]} : vector<8x384xbf16> to vector<8x32xbf16>
    %16 = vector.extract_strided_slice %12 {offsets = [0, 96], sizes = [8, 32], strides = [1, 1]} : vector<8x384xbf16> to vector<8x32xbf16>
    %17 = vector.shape_cast %13 : vector<8x32xbf16> to vector<1x8x32xbf16>
    %18 = vector.shape_cast %14 : vector<8x32xbf16> to vector<1x8x32xbf16>
    %19 = vector.shape_cast %15 : vector<8x32xbf16> to vector<1x8x32xbf16>
    %20 = vector.shape_cast %16 : vector<8x32xbf16> to vector<1x8x32xbf16>
    %21 = tpu.concatenate %17, %18, %19, %20 in 0 : vector<1x8x32xbf16>, vector<1x8x32xbf16>, vector<1x8x32xbf16>, vector<1x8x32xbf16> -> vector<4x8x32xbf16>
    %22 = vector.extract_strided_slice %12 {offsets = [0, 128], sizes = [8, 32], strides = [1, 1]} : vector<8x384xbf16> to vector<8x32xbf16>
    %23 = vector.extract_strided_slice %12 {offsets = [0, 160], sizes = [8, 32], strides = [1, 1]} : vector<8x384xbf16> to vector<8x32xbf16>
    %24 = vector.extract_strided_slice %12 {offsets = [0, 192], sizes = [8, 32], strides = [1, 1]} : vector<8x384xbf16> to vector<8x32xbf16>
    %25 = vector.extract_strided_slice %12 {offsets = [0, 224], sizes = [8, 32], strides = [1, 1]} : vector<8x384xbf16> to vector<8x32xbf16>
    %26 = vector.shape_cast %22 : vector<8x32xbf16> to vector<1x8x32xbf16>
    %27 = vector.shape_cast %23 : vector<8x32xbf16> to vector<1x8x32xbf16>
    %28 = vector.shape_cast %24 : vector<8x32xbf16> to vector<1x8x32xbf16>
    %29 = vector.shape_cast %25 : vector<8x32xbf16> to vector<1x8x32xbf16>
    %30 = tpu.concatenate %26, %27, %28, %29 in 0 : vector<1x8x32xbf16>, vector<1x8x32xbf16>, vector<1x8x32xbf16>, vector<1x8x32xbf16> -> vector<4x8x32xbf16>
    %31 = vector.extract_strided_slice %12 {offsets = [0, 256], sizes = [8, 32], strides = [1, 1]} : vector<8x384xbf16> to vector<8x32xbf16>
    %32 = vector.extract_strided_slice %12 {offsets = [0, 288], sizes = [8, 32], strides = [1, 1]} : vector<8x384xbf16> to vector<8x32xbf16>
    %33 = vector.extract_strided_slice %12 {offsets = [0, 320], sizes = [8, 32], strides = [1, 1]} : vector<8x384xbf16> to vector<8x32xbf16>
    %34 = vector.extract_strided_slice %12 {offsets = [0, 352], sizes = [8, 32], strides = [1, 1]} : vector<8x384xbf16> to vector<8x32xbf16>
    %35 = vector.shape_cast %31 : vector<8x32xbf16> to vector<1x8x32xbf16>
    %36 = vector.shape_cast %32 : vector<8x32xbf16> to vector<1x8x32xbf16>
    %37 = vector.shape_cast %33 : vector<8x32xbf16> to vector<1x8x32xbf16>
    %38 = vector.shape_cast %34 : vector<8x32xbf16> to vector<1x8x32xbf16>
    %39 = tpu.concatenate %35, %36, %37, %38 in 0 : vector<1x8x32xbf16>, vector<1x8x32xbf16>, vector<1x8x32xbf16>, vector<1x8x32xbf16> -> vector<4x8x32xbf16>
    "tpu.trace_start"() <{level = 10 : i32, message = "htd,hsd->hts"}> : () -> ()
    %cst_8 = arith.constant dense<0.000000e+00> : vector<4x8x8xf32>
    %40 = tpu.matmul %21, %30, %cst_8 {dimension_numbers = #tpu.dot_dimension_numbers<[2], [2], [1], [1], [0, 0, 0, 1, 1, 1], [0], [0]>} : vector<4x8x32xbf16>, vector<4x8x32xbf16>, vector<4x8x8xf32> -> vector<4x8x8xf32>
    "tpu.trace_stop"() : () -> ()
    %cst_9 = arith.constant dense<0xFF800000> : vector<4x8xf32>
    %41 = vector.multi_reduction <maximumf>, %40, %cst_9 [2] : vector<4x8x8xf32> to vector<4x8xf32>
    %42 = vector.shape_cast %41 : vector<4x8xf32> to vector<4x8x1xf32>
    %43 = vector.broadcast %42 : vector<4x8x1xf32> to vector<4x8x8xf32>
    %44 = arith.subf %40, %43 : vector<4x8x8xf32>
    %45 = math.exp %44 : vector<4x8x8xf32>
    %cst_10 = arith.constant dense<0.000000e+00> : vector<4x8xf32>
    %46 = vector.multi_reduction <add>, %45, %cst_10 [2] : vector<4x8x8xf32> to vector<4x8xf32>
    %47 = vector.shape_cast %46 : vector<4x8xf32> to vector<4x8x1xf32>
    %48 = arith.truncf %45 : vector<4x8x8xf32> to vector<4x8x8xbf16>
    "tpu.trace_start"() <{level = 10 : i32, message = "hts,hsd->htd"}> : () -> ()
    %cst_11 = arith.constant dense<0.000000e+00> : vector<4x8x32xf32>
    %49 = tpu.matmul %48, %39, %cst_11 {dimension_numbers = #tpu.dot_dimension_numbers<[2], [1], [1], [2], [0, 0, 0, 1, 1, 2], [0], [0]>} : vector<4x8x8xbf16>, vector<4x8x32xbf16>, vector<4x8x32xf32> -> vector<4x8x32xf32>
    "tpu.trace_stop"() : () -> ()
    %50 = tpu.reciprocal %47 {approx = true} : vector<4x8x1xf32> -> vector<4x8x1xf32>
    %51 = vector.broadcast %50 : vector<4x8x1xf32> to vector<4x8x32xf32>
    %52 = arith.mulf %49, %51 : vector<4x8x32xf32>
    %53 = vector.extract_strided_slice %52 {offsets = [0, 0, 0], sizes = [1, 8, 32], strides = [1, 1, 1]} : vector<4x8x32xf32> to vector<1x8x32xf32>
    %54 = vector.shape_cast %53 : vector<1x8x32xf32> to vector<8x32xf32>
    %c0_12 = arith.constant 0 : index
    %c0_13 = arith.constant 0 : index
    %55 = vector.load %arg21[%c0_12, %c0_13] : memref<8x128xf32, #tpu.memory_space<vmem>>, vector<8x32xf32>
    tpu.vector_store %arg21[%c0_12, %c0_13], %54 {strides = array<i32>} : memref<8x128xf32, #tpu.memory_space<vmem>>, vector<8x32xf32>,
    %56 = vector.extract_strided_slice %52 {offsets = [1, 0, 0], sizes = [1, 8, 32], strides = [1, 1, 1]} : vector<4x8x32xf32> to vector<1x8x32xf32>
    %57 = vector.shape_cast %56 : vector<1x8x32xf32> to vector<8x32xf32>
    %c0_14 = arith.constant 0 : index
    %c32 = arith.constant 32 : index
    %58 = vector.load %arg21[%c0_14, %c32] : memref<8x128xf32, #tpu.memory_space<vmem>>, vector<8x32xf32>
    tpu.vector_store %arg21[%c0_14, %c32], %57 {strides = array<i32>} : memref<8x128xf32, #tpu.memory_space<vmem>>, vector<8x32xf32>,
    %59 = vector.extract_strided_slice %52 {offsets = [2, 0, 0], sizes = [1, 8, 32], strides = [1, 1, 1]} : vector<4x8x32xf32> to vector<1x8x32xf32>
    %60 = vector.shape_cast %59 : vector<1x8x32xf32> to vector<8x32xf32>
    %c0_15 = arith.constant 0 : index
    %c64 = arith.constant 64 : index
    %61 = vector.load %arg21[%c0_15, %c64] : memref<8x128xf32, #tpu.memory_space<vmem>>, vector<8x32xf32>
    tpu.vector_store %arg21[%c0_15, %c64], %60 {strides = array<i32>} : memref<8x128xf32, #tpu.memory_space<vmem>>, vector<8x32xf32>,
    %62 = vector.extract_strided_slice %52 {offsets = [3, 0, 0], sizes = [1, 8, 32], strides = [1, 1, 1]} : vector<4x8x32xf32> to vector<1x8x32xf32>
    %63 = vector.shape_cast %62 : vector<1x8x32xf32> to vector<8x32xf32>
    %c0_16 = arith.constant 0 : index
    %c96 = arith.constant 96 : index
    %64 = vector.load %arg21[%c0_16, %c96] : memref<8x128xf32, #tpu.memory_space<vmem>>, vector<8x32xf32>
    tpu.vector_store %arg21[%c0_16, %c96], %63 {strides = array<i32>} : memref<8x128xf32, #tpu.memory_space<vmem>>, vector<8x32xf32>,
    %c0_17 = arith.constant 0 : index
    %c0_18 = arith.constant 0 : index
    %65 = vector.load %arg21[%c0_17, %c0_18] : memref<8x128xf32, #tpu.memory_space<vmem>>, vector<8x128xf32>
    %66 = arith.truncf %65 : vector<8x128xf32> to vector<8x128xbf16>
    %c0_19 = arith.constant 0 : index
    %c0_20 = arith.constant 0 : index
    %c0_21 = arith.constant 0 : index
    %67 = vector.load %arg7[%c0_19, %c0_20, %c0_21] : memref<1x128x128xbf16, #tpu.memory_space<vmem>>, vector<1x128x128xbf16>
    %68 = vector.shape_cast %67 : vector<1x128x128xbf16> to vector<128x128xbf16>
    %cst_22 = arith.constant dense<0.000000e+00> : vector<8x128xf32>
    %69 = tpu.matmul %66, %68, %cst_22 {dimension_numbers = #tpu.dot_dimension_numbers<[1], [0], [0], [1], [0, 0, 1, 1], [], []>} : vector<8x128xbf16>, vector<128x128xbf16>, vector<8x128xf32> -> vector<8x128xf32>
    %c0_23 = arith.constant 0 : index
    %c0_24 = arith.constant 0 : index
    %c0_25 = arith.constant 0 : index
    %70 = vector.load %arg8[%c0_23, %c0_24, %c0_25] : memref<1x1x128xf32, #tpu.memory_space<vmem>>, vector<1x1x128xf32>
    %71 = vector.shape_cast %70 : vector<1x1x128xf32> to vector<1x128xf32>
    %72 = vector.broadcast %71 : vector<1x128xf32> to vector<8x128xf32>
    %73 = arith.addf %69, %72 : vector<8x128xf32>
    %74 = arith.addf %3, %73 : vector<8x128xf32>
    %c0_26 = arith.constant 0 : index
    %c0_27 = arith.constant 0 : index
    %c0_28 = arith.constant 0 : index
    %75 = vector.load %arg9[%c0_26, %c0_27, %c0_28] : memref<1x1x128xf32, #tpu.memory_space<vmem>>, vector<1x1x128xf32>
    %76 = vector.shape_cast %75 : vector<1x1x128xf32> to vector<1x128xf32>
    %c0_29 = arith.constant 0 : index
    %c0_30 = arith.constant 0 : index
    %c0_31 = arith.constant 0 : index
    %77 = vector.load %arg10[%c0_29, %c0_30, %c0_31] : memref<1x1x128xf32, #tpu.memory_space<vmem>>, vector<1x1x128xf32>
    %78 = vector.shape_cast %77 : vector<1x1x128xf32> to vector<1x128xf32>
    %cst_32 = arith.constant dense<0.000000e+00> : vector<8xf32>
    %79 = vector.multi_reduction <add>, %74, %cst_32 [1] : vector<8x128xf32> to vector<8xf32>
    %80 = vector.shape_cast %79 : vector<8xf32> to vector<8x1xf32>
    %cst_33 = arith.constant 1.280000e+02 : f32
    %81 = vector.broadcast %cst_33 : f32 to vector<8x1xf32>
    %82 = arith.divf %80, %81 : vector<8x1xf32>
    %83 = vector.broadcast %82 : vector<8x1xf32> to vector<8x128xf32>
    %84 = arith.subf %74, %83 : vector<8x128xf32>
    %85 = arith.mulf %84, %84 : vector<8x128xf32>
    %cst_34 = arith.constant dense<0.000000e+00> : vector<8xf32>
    %86 = vector.multi_reduction <add>, %85, %cst_34 [1] : vector<8x128xf32> to vector<8xf32>
    %87 = vector.shape_cast %86 : vector<8xf32> to vector<8x1xf32>
    %cst_35 = arith.constant 1.280000e+02 : f32
    %88 = vector.broadcast %cst_35 : f32 to vector<8x1xf32>
    %89 = arith.divf %87, %88 : vector<8x1xf32>
    %cst_36 = arith.constant 9.99999974E-6 : f32
    %90 = vector.broadcast %cst_36 : f32 to vector<8x1xf32>
    %91 = arith.addf %89, %90 : vector<8x1xf32>
    %92 = math.rsqrt %91 : vector<8x1xf32>
    %93 = vector.broadcast %92 : vector<8x1xf32> to vector<8x128xf32>
    %94 = arith.mulf %84, %93 : vector<8x128xf32>
    %95 = vector.broadcast %76 : vector<1x128xf32> to vector<8x128xf32>
    %96 = arith.mulf %94, %95 : vector<8x128xf32>
    %97 = vector.broadcast %78 : vector<1x128xf32> to vector<8x128xf32>
    %98 = arith.addf %96, %97 : vector<8x128xf32>
    %99 = arith.truncf %98 : vector<8x128xf32> to vector<8x128xbf16>
    %c0_37 = arith.constant 0 : index
    %c0_38 = arith.constant 0 : index
    %c0_39 = arith.constant 0 : index
    %100 = vector.load %arg11[%c0_37, %c0_38, %c0_39] : memref<1x128x256xbf16, #tpu.memory_space<vmem>>, vector<1x128x256xbf16>
    %101 = vector.shape_cast %100 : vector<1x128x256xbf16> to vector<128x256xbf16>
    %cst_40 = arith.constant dense<0.000000e+00> : vector<8x256xf32>
    %102 = tpu.matmul %99, %101, %cst_40 {dimension_numbers = #tpu.dot_dimension_numbers<[1], [0], [0], [1], [0, 0, 1, 1], [], []>} : vector<8x128xbf16>, vector<128x256xbf16>, vector<8x256xf32> -> vector<8x256xf32>
    %c0_41 = arith.constant 0 : index
    %c0_42 = arith.constant 0 : index
    %c0_43 = arith.constant 0 : index
    %103 = vector.load %arg12[%c0_41, %c0_42, %c0_43] : memref<1x1x256xf32, #tpu.memory_space<vmem>>, vector<1x1x256xf32>
    %104 = vector.shape_cast %103 : vector<1x1x256xf32> to vector<1x256xf32>
    %105 = vector.broadcast %104 : vector<1x256xf32> to vector<8x256xf32>
    %106 = arith.addf %102, %105 : vector<8x256xf32>
    %cst_44 = arith.constant 0.000000e+00 : f32
    %107 = vector.broadcast %cst_44 : f32 to vector<8x256xf32>
    %108 = arith.maximumf %106, %107 : vector<8x256xf32>
    %109 = arith.truncf %108 : vector<8x256xf32> to vector<8x256xbf16>
    %c0_45 = arith.constant 0 : index
    %c0_46 = arith.constant 0 : index
    %c0_47 = arith.constant 0 : index
    %110 = vector.load %arg13[%c0_45, %c0_46, %c0_47] : memref<1x256x128xbf16, #tpu.memory_space<vmem>>, vector<1x256x128xbf16>
    %111 = vector.shape_cast %110 : vector<1x256x128xbf16> to vector<256x128xbf16>
    %cst_48 = arith.constant dense<0.000000e+00> : vector<8x128xf32>
    %112 = tpu.matmul %109, %111, %cst_48 {dimension_numbers = #tpu.dot_dimension_numbers<[1], [0], [0], [1], [0, 0, 1, 1], [], []>} : vector<8x256xbf16>, vector<256x128xbf16>, vector<8x128xf32> -> vector<8x128xf32>
    %c0_49 = arith.constant 0 : index
    %c0_50 = arith.constant 0 : index
    %c0_51 = arith.constant 0 : index
    %113 = vector.load %arg14[%c0_49, %c0_50, %c0_51] : memref<1x1x128xf32, #tpu.memory_space<vmem>>, vector<1x1x128xf32>
    %114 = vector.shape_cast %113 : vector<1x1x128xf32> to vector<1x128xf32>
    %115 = vector.broadcast %114 : vector<1x128xf32> to vector<8x128xf32>
    %116 = arith.addf %112, %115 : vector<8x128xf32>
    %117 = arith.addf %98, %116 : vector<8x128xf32>
    %c0_52 = arith.constant 0 : index
    %c0_53 = arith.constant 0 : index
    %c0_54 = arith.constant 0 : index
    %118 = vector.load %arg15[%c0_52, %c0_53, %c0_54] : memref<1x1x128xf32, #tpu.memory_space<vmem>>, vector<1x1x128xf32>
    %119 = vector.shape_cast %118 : vector<1x1x128xf32> to vector<1x128xf32>
    %c0_55 = arith.constant 0 : index
    %c0_56 = arith.constant 0 : index
    %c0_57 = arith.constant 0 : index
    %120 = vector.load %arg16[%c0_55, %c0_56, %c0_57] : memref<1x1x128xf32, #tpu.memory_space<vmem>>, vector<1x1x128xf32>
    %121 = vector.shape_cast %120 : vector<1x1x128xf32> to vector<1x128xf32>
    %cst_58 = arith.constant dense<0.000000e+00> : vector<8xf32>
    %122 = vector.multi_reduction <add>, %117, %cst_58 [1] : vector<8x128xf32> to vector<8xf32>
    %123 = vector.shape_cast %122 : vector<8xf32> to vector<8x1xf32>
    %cst_59 = arith.constant 1.280000e+02 : f32
    %124 = vector.broadcast %cst_59 : f32 to vector<8x1xf32>
    %125 = arith.divf %123, %124 : vector<8x1xf32>
    %126 = vector.broadcast %125 : vector<8x1xf32> to vector<8x128xf32>
    %127 = arith.subf %117, %126 : vector<8x128xf32>
    %128 = arith.mulf %127, %127 : vector<8x128xf32>
    %cst_60 = arith.constant dense<0.000000e+00> : vector<8xf32>
    %129 = vector.multi_reduction <add>, %128, %cst_60 [1] : vector<8x128xf32> to vector<8xf32>
    %130 = vector.shape_cast %129 : vector<8xf32> to vector<8x1xf32>
    %cst_61 = arith.constant 1.280000e+02 : f32
    %131 = vector.broadcast %cst_61 : f32 to vector<8x1xf32>
    %132 = arith.divf %130, %131 : vector<8x1xf32>
    %cst_62 = arith.constant 9.99999974E-6 : f32
    %133 = vector.broadcast %cst_62 : f32 to vector<8x1xf32>
    %134 = arith.addf %132, %133 : vector<8x1xf32>
    %135 = math.rsqrt %134 : vector<8x1xf32>
    %136 = vector.broadcast %135 : vector<8x1xf32> to vector<8x128xf32>
    %137 = arith.mulf %127, %136 : vector<8x128xf32>
    %138 = vector.broadcast %119 : vector<1x128xf32> to vector<8x128xf32>
    %139 = arith.mulf %137, %138 : vector<8x128xf32>
    %140 = vector.broadcast %121 : vector<1x128xf32> to vector<8x128xf32>
    %141 = arith.addf %139, %140 : vector<8x128xf32>
    %c0_63 = arith.constant 0 : index
    %c0_64 = arith.constant 0 : index
    %142 = vector.load %arg20[%c0_63, %c0_64] : memref<8x128xf32, #tpu.memory_space<vmem>>, vector<8x128xf32>
    tpu.vector_store %arg20[%c0_63, %c0_64], %141 {strides = array<i32>} : memref<8x128xf32, #tpu.memory_space<vmem>>, vector<8x128xf32>,
    %c1_i32 = arith.constant 1 : i32
    %143 = arith.cmpi eq, %arg1, %c1_i32 : i32
    %144 = arith.extui %143 : i1 to i32
    %c0_i32_65 = arith.constant 0 : i32
    %145 = arith.cmpi ne, %144, %c0_i32_65 : i32
    scf.if %145 {
      %146 = arith.truncf %141 : vector<8x128xf32> to vector<8x128xbf16>
      %c0_66 = arith.constant 0 : index
      %c0_67 = arith.constant 0 : index
      %147 = vector.load %arg17[%c0_66, %c0_67] : memref<128x128xbf16, #tpu.memory_space<vmem>>, vector<128x128xbf16>
      %cst_68 = arith.constant dense<0.000000e+00> : vector<8x128xf32>
      %148 = tpu.matmul %146, %147, %cst_68 {dimension_numbers = #tpu.dot_dimension_numbers<[1], [0], [0], [1], [0, 0, 1, 1], [], []>} : vector<8x128xbf16>, vector<128x128xbf16>, vector<8x128xf32> -> vector<8x128xf32>
      %c0_69 = arith.constant 0 : index
      %c0_70 = arith.constant 0 : index
      %149 = vector.load %arg18[%c0_69, %c0_70] : memref<1x128xf32, #tpu.memory_space<vmem>>, vector<1x128xf32>
      %150 = vector.broadcast %149 : vector<1x128xf32> to vector<8x128xf32>
      %151 = arith.addf %148, %150 : vector<8x128xf32>
      %c0_71 = arith.constant 0 : index
      %c0_72 = arith.constant 0 : index
      %c0_73 = arith.constant 0 : index
      %152 = vector.load %arg19[%c0_71, %c0_72, %c0_73] : memref<1x8x128xf32, #tpu.memory_space<vmem>>, vector<1x8x128xf32>
      %153 = vector.shape_cast %152 : vector<1x8x128xf32> to vector<8x128xf32>
      %154 = vector.shape_cast %151 : vector<8x128xf32> to vector<1x8x128xf32>
      tpu.vector_store %arg19[%c0_71, %c0_72, %c0_73], %154 {strides = array<i32>} : memref<1x8x128xf32, #tpu.memory_space<vmem>>, vector<1x8x128xf32>,
    } else {
    }
    return
  }
  func.func @transform_0(%arg0: i32, %arg1: i32) -> (i32, i32, i32) {
    %c0_i32 = arith.constant 0 : i32
    %c0_i32_0 = arith.constant 0 : i32
    %c0_i32_1 = arith.constant 0 : i32
    return %arg0, %c0_i32, %c0_i32_0 : i32, i32, i32
  }
  func.func @transform_1(%arg0: i32, %arg1: i32) -> (i32, i32) {
    %c0_i32 = arith.constant 0 : i32
    %c0_i32_0 = arith.constant 0 : i32
    %c0_i32_1 = arith.constant 0 : i32
    return %c0_i32, %c0_i32_0 : i32, i32
  }
  func.func @transform_2(%arg0: i32, %arg1: i32) -> (i32, i32) {
    %c0_i32 = arith.constant 0 : i32
    %c0_i32_0 = arith.constant 0 : i32
    %c0_i32_1 = arith.constant 0 : i32
    return %c0_i32, %c0_i32_0 : i32, i32
  }
  func.func @transform_3(%arg0: i32, %arg1: i32) -> (i32, i32, i32) {
    %c0_i32 = arith.constant 0 : i32
    %c0_i32_0 = arith.constant 0 : i32
    %c0_i32_1 = arith.constant 0 : i32
    return %arg1, %c0_i32, %c0_i32_0 : i32, i32, i32
  }
  func.func @transform_4(%arg0: i32, %arg1: i32) -> (i32, i32, i32) {
    %c0_i32 = arith.constant 0 : i32
    %c0_i32_0 = arith.constant 0 : i32
    %c0_i32_1 = arith.constant 0 : i32
    return %arg1, %c0_i32, %c0_i32_0 : i32, i32, i32
  }
  func.func @transform_5(%arg0: i32, %arg1: i32) -> (i32, i32, i32) {
    %c0_i32 = arith.constant 0 : i32
    %c0_i32_0 = arith.constant 0 : i32
    %c0_i32_1 = arith.constant 0 : i32
    return %arg1, %c0_i32, %c0_i32_0 : i32, i32, i32
  }
  func.func @transform_6(%arg0: i32, %arg1: i32) -> (i32, i32, i32) {
    %c0_i32 = arith.constant 0 : i32
    %c0_i32_0 = arith.constant 0 : i32
    %c0_i32_1 = arith.constant 0 : i32
    return %arg1, %c0_i32, %c0_i32_0 : i32, i32, i32
  }
  func.func @transform_7(%arg0: i32, %arg1: i32) -> (i32, i32, i32) {
    %c0_i32 = arith.constant 0 : i32
    %c0_i32_0 = arith.constant 0 : i32
    %c0_i32_1 = arith.constant 0 : i32
    return %arg1, %c0_i32, %c0_i32_0 : i32, i32, i32
  }
  func.func @transform_8(%arg0: i32, %arg1: i32) -> (i32, i32, i32) {
    %c0_i32 = arith.constant 0 : i32
    %c0_i32_0 = arith.constant 0 : i32
    %c0_i32_1 = arith.constant 0 : i32
    return %arg1, %c0_i32, %c0_i32_0 : i32, i32, i32
  }
  func.func @transform_9(%arg0: i32, %arg1: i32) -> (i32, i32, i32) {
    %c0_i32 = arith.constant 0 : i32
    %c0_i32_0 = arith.constant 0 : i32
    %c0_i32_1 = arith.constant 0 : i32
    return %arg1, %c0_i32, %c0_i32_0 : i32, i32, i32
  }
  func.func @transform_10(%arg0: i32, %arg1: i32) -> (i32, i32, i32) {
    %c0_i32 = arith.constant 0 : i32
    %c0_i32_0 = arith.constant 0 : i32
    %c0_i32_1 = arith.constant 0 : i32
    return %arg1, %c0_i32, %c0_i32_0 : i32, i32, i32
  }
  func.func @transform_11(%arg0: i32, %arg1: i32) -> (i32, i32, i32) {
    %c0_i32 = arith.constant 0 : i32
    %c0_i32_0 = arith.constant 0 : i32
    %c0_i32_1 = arith.constant 0 : i32
    return %arg1, %c0_i32, %c0_i32_0 : i32, i32, i32
  }
  func.func @transform_12(%arg0: i32, %arg1: i32) -> (i32, i32, i32) {
    %c0_i32 = arith.constant 0 : i32
    %c0_i32_0 = arith.constant 0 : i32
    %c0_i32_1 = arith.constant 0 : i32
    return %arg1, %c0_i32, %c0_i32_0 : i32, i32, i32
  }
  func.func @transform_13(%arg0: i32, %arg1: i32) -> (i32, i32, i32) {
    %c0_i32 = arith.constant 0 : i32
    %c0_i32_0 = arith.constant 0 : i32
    %c0_i32_1 = arith.constant 0 : i32
    return %arg1, %c0_i32, %c0_i32_0 : i32, i32, i32
  }
  func.func @transform_14(%arg0: i32, %arg1: i32) -> (i32, i32, i32) {
    %c0_i32 = arith.constant 0 : i32
    %c0_i32_0 = arith.constant 0 : i32
    %c0_i32_1 = arith.constant 0 : i32
    return %arg1, %c0_i32, %c0_i32_0 : i32, i32, i32
  }
  func.func @transform_15(%arg0: i32, %arg1: i32) -> (i32, i32) {
    %c0_i32 = arith.constant 0 : i32
    %c0_i32_0 = arith.constant 0 : i32
    %c0_i32_1 = arith.constant 0 : i32
    return %c0_i32, %c0_i32_0 : i32, i32
  }
  func.func @transform_16(%arg0: i32, %arg1: i32) -> (i32, i32) {
    %c0_i32 = arith.constant 0 : i32
    %c0_i32_0 = arith.constant 0 : i32
    %c0_i32_1 = arith.constant 0 : i32
    return %c0_i32, %c0_i32_0 : i32, i32
  }
  func.func @transform_17(%arg0: i32, %arg1: i32) -> (i32, i32, i32) {
    %c0_i32 = arith.constant 0 : i32
    %c0_i32_0 = arith.constant 0 : i32
    %c0_i32_1 = arith.constant 0 : i32
    return %arg0, %c0_i32, %c0_i32_0 : i32, i32, i32
  }
}

</mosaic_0001>

<llo_original>
// kernel: tpu_custom_call.1
$region0: #{tpu_custom_call.1}
  #allocation0 [shape = 'u32[]', space=smem, size = 0x4, offset = 0x4, fixed_abs, tag = 'smem constant byte address 0x4 - core index']
  #allocation1 [shape = 'u32[144,128]{1,0:T(1,128)}', space=vmem, size = 0x12000, scoped, tag = 'internal scratch']
  #allocation2 [shape = 'f32[8,128]{1,0:T(8,128)}', space=vmem, size = 0x1000, scoped, tag = 'scratch operand']
  #allocation3 [shape = 'f32[8,128]{1,0:T(8,128)}', space=vmem, size = 0x1000, scoped, tag = 'scratch operand']
  %s0 = inlined_call_operand.hbm [shape: f32[2,8,128], index: 0, kind: input, shape index: {}]
  %s1 = inlined_call_operand.hbm [shape: f32[128,128], index: 1, kind: input, shape index: {}]
  %s2 = inlined_call_operand.hbm [shape: f32[1,128], index: 2, kind: input, shape index: {}]
  %s3 = inlined_call_operand.hbm [shape: bf16[2,128,384], index: 3, kind: input, shape index: {}]
  %s4 = inlined_call_operand.hbm [shape: f32[2,1,384], index: 4, kind: input, shape index: {}]
  %s5 = inlined_call_operand.hbm [shape: bf16[2,128,128], index: 5, kind: input, shape index: {}]
  %s6 = inlined_call_operand.hbm [shape: f32[2,1,128], index: 6, kind: input, shape index: {}]
  %s7 = inlined_call_operand.hbm [shape: f32[2,1,128], index: 7, kind: input, shape index: {}]
  %s8 = inlined_call_operand.hbm [shape: f32[2,1,128], index: 8, kind: input, shape index: {}]
  %s9 = inlined_call_operand.hbm [shape: bf16[2,128,256], index: 9, kind: input, shape index: {}]
  %s10 = inlined_call_operand.hbm [shape: f32[2,1,256], index: 10, kind: input, shape index: {}]
  %s11 = inlined_call_operand.hbm [shape: bf16[2,256,128], index: 11, kind: input, shape index: {}]
  %s12 = inlined_call_operand.hbm [shape: f32[2,1,128], index: 12, kind: input, shape index: {}]
  %s13 = inlined_call_operand.hbm [shape: f32[2,1,128], index: 13, kind: input, shape index: {}]
  %s14 = inlined_call_operand.hbm [shape: f32[2,1,128], index: 14, kind: input, shape index: {}]
  %s15 = inlined_call_operand.hbm [shape: bf16[128,128], index: 15, kind: input, shape index: {}]
  %s16 = inlined_call_operand.hbm [shape: f32[1,128], index: 16, kind: input, shape index: {}]
  %s17 = inlined_call_operand.hbm [shape: f32[2,8,128], index: 17, kind: output, shape index: {}]
  %s18 = sld [smem:[#allocation0]]
  $region177: #{tpu_custom_call.1} parent=0
    _
  %s20 = ssub.s32 1, %s18
  %s21 = scalar_select 0, %s20, %s18
  $region1: #{tpu_custom_call.1} parent=0
    #allocation4 [shape = 'u8[8192]{0}', space=vmem, size = 0x2000, scoped, tag = 'input window, operand 0']
    #allocation5 [shape = 's32[2]{0}', space=sflag, size = 0x8, scoped, tag = 'scoped memory for tpu_custom_call.1']
    #allocation6 [shape = 's32[2]{0}', space=sflag, size = 0x8, scoped, tag = 'scoped memory for tpu_custom_call.1']
    #allocation7 [shape = 'u8[65536]{0}', space=vmem, size = 0x10000, scoped, tag = 'input window, operand 1, single buffered']
    #allocation8 [shape = 's32[1]{0}', space=sflag, size = 0x4, scoped, tag = 'scoped memory for tpu_custom_call.1']
    #allocation9 [shape = 'u8[512]{0}', space=vmem, size = 0x400, scoped, tag = 'input window, operand 2, single buffered']
    #allocation10 [shape = 'u8[196608]{0}', space=vmem, size = 0x30000, scoped, tag = 'input window, operand 3']
    #allocation11 [shape = 's32[2]{0}', space=sflag, size = 0x8, scoped, tag = 'scoped memory for tpu_custom_call.1']
    #allocation12 [shape = 'u8[3072]{0}', space=vmem, size = 0xc00, scoped, tag = 'input window, operand 4']
    #allocation13 [shape = 'u8[65536]{0}', space=vmem, size = 0x10000, scoped, tag = 'input window, operand 5']
    #allocation14 [shape = 's32[2]{0}', space=sflag, size = 0x8, scoped, tag = 'scoped memory for tpu_custom_call.1']
    #allocation15 [shape = 'u8[1024]{0}', space=vmem, size = 0x400, scoped, tag = 'input window, operand 6']
    #allocation16 [shape = 'u8[1024]{0}', space=vmem, size = 0x400, scoped, tag = 'input window, operand 7']
    #allocation17 [shape = 's32[2]{0}', space=sflag, size = 0x8, scoped, tag = 'scoped memory for tpu_custom_call.1']
    #allocation18 [shape = 'u8[1024]{0}', space=vmem, size = 0x400, scoped, tag = 'input window, operand 8']
    #allocation19 [shape = 'u8[131072]{0}', space=vmem, size = 0x20000, scoped, tag = 'input window, operand 9']
    #allocation20 [shape = 's32[2]{0}', space=sflag, size = 0x8, scoped, tag = 'scoped memory for tpu_custom_call.1']
    #allocation21 [shape = 'u8[2048]{0}', space=vmem, size = 0x800, scoped, tag = 'input window, operand 10']
    #allocation22 [shape = 'u8[131072]{0}', space=vmem, size = 0x20000, scoped, tag = 'input window, operand 11']
    #allocation23 [shape = 's32[2]{0}', space=sflag, size = 0x8, scoped, tag = 'scoped memory for tpu_custom_call.1']
    #allocation24 [shape = 'u8[1024]{0}', space=vmem, size = 0x400, scoped, tag = 'input window, operand 12']
    #allocation25 [shape = 'u8[1024]{0}', space=vmem, size = 0x400, scoped, tag = 'input window, operand 13']
    #allocation26 [shape = 's32[2]{0}', space=sflag, size = 0x8, scoped, tag = 'scoped memory for tpu_custom_call.1']
    #allocation27 [shape = 'u8[1024]{0}', space=vmem, size = 0x400, scoped, tag = 'input window, operand 14']
    #allocation28 [shape = 'u8[32768]{0}', space=vmem, size = 0x8000, scoped, tag = 'input window, operand 15, single buffered']
    #allocation29 [shape = 's32[1]{0}', space=sflag, size = 0x4, scoped, tag = 'scoped memory for tpu_custom_call.1']
    #allocation30 [shape = 'u8[512]{0}', space=vmem, size = 0x400, scoped, tag = 'input window, operand 16, single buffered']
    #allocation31 [shape = 'u8[8192]{0}', space=vmem, size = 0x2000, scoped, tag = 'output window, operand 0']
    %22 = vsyncpa [#allocation5], 0
    %s23 = scalar_lea.sflag [#allocation5], 1
    %24 = vsyncpa %s23, 0
    %25 = vsyncpa [#allocation8], 0
    %26 = vsyncpa [#allocation11], 0
    %s27 = scalar_lea.sflag [#allocation11], 1
    %28 = vsyncpa %s27, 0
    %29 = vsyncpa [#allocation14], 0
    %s30 = scalar_lea.sflag [#allocation14], 1
    %31 = vsyncpa %s30, 0
    %32 = vsyncpa [#allocation17], 0
    %s33 = scalar_lea.sflag [#allocation17], 1
    %34 = vsyncpa %s33, 0
    %35 = vsyncpa [#allocation20], 0
    %s36 = scalar_lea.sflag [#allocation20], 1
    %37 = vsyncpa %s36, 0
    %38 = vsyncpa [#allocation23], 0
    %s39 = scalar_lea.sflag [#allocation23], 1
    %40 = vsyncpa %s39, 0
    %41 = vsyncpa [#allocation26], 0
    %s42 = scalar_lea.sflag [#allocation26], 1
    %43 = vsyncpa %s42, 0
    %44 = vsyncpa [#allocation29], 0
    %45 = vsyncpa [#allocation6], 0
    %s46 = scalar_lea.sflag [#allocation6], 1
    %47 = vsyncpa %s46, 0
    loop: start=0, step=1, limit=6
    $region2: #{tpu_custom_call.1} parent=1 // loop_pre_header
      _
    $region3: #{tpu_custom_call.1} parent=1 // loop_header
      %s49 = sphi 0, %s53
      %p50 = scmp.ge.s32.totalorder %s49, 6
      %s56 = sphi 0, %s68
      %s57 = sphi 0, %s64
      %s58 = sphi 0, %s56
      %s59 = sphi 0, %s57
      %s60 = sphi 0, %s58
      %s61 = sphi 0, %s59
      %s71 = sphi 0, %s73
      %s74 = sphi 0, %s71
      %s75 = sphi 0, %s74
      %s91 = sphi 0, %s75
      %s95 = sphi 0, %s95
      %s97 = sphi 0, %s95
      %s98 = sphi 0, %s97
      %s112 = sphi 0, %s98
      %s116 = sphi 0, %s116
      %s118 = sphi 0, %s116
      %s119 = sphi 0, %s118
      %s133 = sphi 0, %s119
      %s139 = sphi 0, %s141
      %s142 = sphi 0, %s139
      %s143 = sphi 0, %s142
      %s159 = sphi 0, %s143
      %s165 = sphi 0, %s167
      %s168 = sphi 0, %s165
      %s169 = sphi 0, %s168
      %s185 = sphi 0, %s169
      %s191 = sphi 0, %s193
      %s194 = sphi 0, %s191
      %s195 = sphi 0, %s194
      %s211 = sphi 0, %s195
      %s217 = sphi 0, %s219
      %s220 = sphi 0, %s217
      %s221 = sphi 0, %s220
      %s237 = sphi 0, %s221
      %s243 = sphi 0, %s245
      %s246 = sphi 0, %s243
      %s247 = sphi 0, %s246
      %s263 = sphi 0, %s247
      %s269 = sphi 0, %s271
      %s272 = sphi 0, %s269
      %s273 = sphi 0, %s272
      %s289 = sphi 0, %s273
      %s295 = sphi 0, %s297
      %s298 = sphi 0, %s295
      %s299 = sphi 0, %s298
      %s315 = sphi 0, %s299
      %s321 = sphi 0, %s323
      %s324 = sphi 0, %s321
      %s325 = sphi 0, %s324
      %s341 = sphi 0, %s325
      %s347 = sphi 0, %s349
      %s350 = sphi 0, %s347
      %s351 = sphi 0, %s350
      %s367 = sphi 0, %s351
      %s373 = sphi 0, %s375
      %s376 = sphi 0, %s373
      %s377 = sphi 0, %s376
      %s393 = sphi 0, %s377
      %s399 = sphi 0, %s401
      %s402 = sphi 0, %s399
      %s403 = sphi 0, %s402
      %s419 = sphi 0, %s403
      %s425 = sphi 0, %s427
      %s428 = sphi 0, %s425
      %s429 = sphi 0, %s428
      %s445 = sphi 0, %s429
      %s449 = sphi 0, %s449
      %s451 = sphi 0, %s449
      %s452 = sphi 0, %s451
      %s466 = sphi 0, %s452
      %s470 = sphi 0, %s470
      %s472 = sphi 0, %s470
      %s473 = sphi 0, %s472
      %s487 = sphi 0, %s473
      %s493 = sphi 0, %s495
      %s496 = sphi 0, %s493
      %s497 = sphi 0, %s496
      %s513 = sphi 0, %s497
    $region4: #{tpu_custom_call.1} parent=1 // loop_header_branch
      %52 = sbr.rel (%p50) target = $region8
    $region5: #{tpu_custom_call.1} parent=1 // loop_body
      %s54 = ssub.s32 %s49, 1
      %s55 = ssub.s32 %s49, 2
      %s62 = sadd.s32 1, %s57
      %p63 = scmp.ge.s32.totalorder %s62, 2
      %s64 = scalar_select %p63, 0, %s62
      %s65 = sadd.s32 1, %s56
      %s66 = scalar_select %p63, %s65, %s56
      %p67 = scmp.ge.s32.totalorder %s66, 2
      %s68 = scalar_select %p67, 0, %s66
      %s69 = ssub.s32 %s56, %s68
      %p70 = scmp.eq.s32.totalorder %s69, 0
      %s72 = sadd.s32 %s71, 1
      %s73 = scalar_select %p70, %s71, %s72
      %p76 = pneg %p70
      %p77 = scmp.eq.s32.totalorder %s49, 3
      %p78 = por %p76, %p77
      %p79 = scmp.ne.s32.totalorder %s71, %s74
      %p80 = scmp.eq.s32.totalorder %s49, 0
      %p81 = por %p79, %p80
      %p82 = scmp.ne.s32.totalorder %s71, %s74
      %p83 = scmp.eq.s32.totalorder %s54, 3
      %p84 = por %p82, %p83
      %p85 = scmp.ne.s32.totalorder %s74, %s75
      %p86 = scmp.eq.s32.totalorder %s54, 0
      %p87 = por %p85, %p86
      %p88 = scmp.ne.s32.totalorder %s74, %s75
      %p89 = scmp.eq.s32.totalorder %s55, 3
      %p90 = por %p88, %p89
      %p92 = scmp.ne.s32.totalorder %s75, %s91
      %p93 = scmp.eq.s32.totalorder %s55, 0
      %p94 = por %p92, %p93
      %s96 = sadd.s32 %s95, 1
      %p99 = scmp.eq.s32.totalorder %s49, 3
      %p100 = scmp.ne.s32.totalorder %s95, %s97
      %p101 = scmp.eq.s32.totalorder %s49, 0
      %p102 = por %p100, %p101
      %p103 = scmp.ne.s32.totalorder %s95, %s97
      %p104 = scmp.eq.s32.totalorder %s54, 3
      %p105 = por %p103, %p104
      %p106 = scmp.ne.s32.totalorder %s97, %s98
      %p107 = scmp.eq.s32.totalorder %s54, 0
      %p108 = por %p106, %p107
      %p109 = scmp.ne.s32.totalorder %s97, %s98
      %p110 = scmp.eq.s32.totalorder %s55, 3
      %p111 = por %p109, %p110
      %p113 = scmp.ne.s32.totalorder %s98, %s112
      %p114 = scmp.eq.s32.totalorder %s55, 0
      %p115 = por %p113, %p114
      %s117 = sadd.s32 %s116, 1
      %p120 = scmp.eq.s32.totalorder %s49, 3
      %p121 = scmp.ne.s32.totalorder %s116, %s118
      %p122 = scmp.eq.s32.totalorder %s49, 0
      %p123 = por %p121, %p122
      %p124 = scmp.ne.s32.totalorder %s116, %s118
      %p125 = scmp.eq.s32.totalorder %s54, 3
      %p126 = por %p124, %p125
      %p127 = scmp.ne.s32.totalorder %s118, %s119
      %p128 = scmp.eq.s32.totalorder %s54, 0
      %p129 = por %p127, %p128
      %p130 = scmp.ne.s32.totalorder %s118, %s119
      %p131 = scmp.eq.s32.totalorder %s55, 3
      %p132 = por %p130, %p131
      %p134 = scmp.ne.s32.totalorder %s119, %s133
      %p135 = scmp.eq.s32.totalorder %s55, 0
      %p136 = por %p134, %p135
      %s137 = ssub.s32 %s57, %s64
      %p138 = scmp.eq.s32.totalorder %s137, 0
      %s140 = sadd.s32 %s139, 1
      %s141 = scalar_select %p138, %s139, %s140
      %p144 = pneg %p138
      %p145 = scmp.eq.s32.totalorder %s49, 3
      %p146 = por %p144, %p145
      %p147 = scmp.ne.s32.totalorder %s139, %s142
      %p148 = scmp.eq.s32.totalorder %s49, 0
      %p149 = por %p147, %p148
      %p150 = scmp.ne.s32.totalorder %s139, %s142
      %p151 = scmp.eq.s32.totalorder %s54, 3
      %p152 = por %p150, %p151
      %p153 = scmp.ne.s32.totalorder %s142, %s143
      %p154 = scmp.eq.s32.totalorder %s54, 0
      %p155 = por %p153, %p154
      %p156 = scmp.ne.s32.totalorder %s142, %s143
      %p157 = scmp.eq.s32.totalorder %s55, 3
      %p158 = por %p156, %p157
      %p160 = scmp.ne.s32.totalorder %s143, %s159
      %p161 = scmp.eq.s32.totalorder %s55, 0
      %p162 = por %p160, %p161
      %s163 = ssub.s32 %s57, %s64
      %p164 = scmp.eq.s32.totalorder %s163, 0
      %s166 = sadd.s32 %s165, 1
      %s167 = scalar_select %p164, %s165, %s166
      %p170 = pneg %p164
      %p171 = scmp.eq.s32.totalorder %s49, 3
      %p172 = por %p170, %p171
      %p173 = scmp.ne.s32.totalorder %s165, %s168
      %p174 = scmp.eq.s32.totalorder %s49, 0
      %p175 = por %p173, %p174
      %p176 = scmp.ne.s32.totalorder %s165, %s168
      %p177 = scmp.eq.s32.totalorder %s54, 3
      %p178 = por %p176, %p177
      %p179 = scmp.ne.s32.totalorder %s168, %s169
      %p180 = scmp.eq.s32.totalorder %s54, 0
      %p181 = por %p179, %p180
      %p182 = scmp.ne.s32.totalorder %s168, %s169
      %p183 = scmp.eq.s32.totalorder %s55, 3
      %p184 = por %p182, %p183
      %p186 = scmp.ne.s32.totalorder %s169, %s185
      %p187 = scmp.eq.s32.totalorder %s55, 0
      %p188 = por %p186, %p187
      %s189 = ssub.s32 %s57, %s64
      %p190 = scmp.eq.s32.totalorder %s189, 0
      %s192 = sadd.s32 %s191, 1
      %s193 = scalar_select %p190, %s191, %s192
      %p196 = pneg %p190
      %p197 = scmp.eq.s32.totalorder %s49, 3
      %p198 = por %p196, %p197
      %p199 = scmp.ne.s32.totalorder %s191, %s194
      %p200 = scmp.eq.s32.totalorder %s49, 0
      %p201 = por %p199, %p200
      %p202 = scmp.ne.s32.totalorder %s191, %s194
      %p203 = scmp.eq.s32.totalorder %s54, 3
      %p204 = por %p202, %p203
      %p205 = scmp.ne.s32.totalorder %s194, %s195
      %p206 = scmp.eq.s32.totalorder %s54, 0
      %p207 = por %p205, %p206
      %p208 = scmp.ne.s32.totalorder %s194, %s195
      %p209 = scmp.eq.s32.totalorder %s55, 3
      %p210 = por %p208, %p209
      %p212 = scmp.ne.s32.totalorder %s195, %s211
      %p213 = scmp.eq.s32.totalorder %s55, 0
      %p214 = por %p212, %p213
      %s215 = ssub.s32 %s57, %s64
      %p216 = scmp.eq.s32.totalorder %s215, 0
      %s218 = sadd.s32 %s217, 1
      %s219 = scalar_select %p216, %s217, %s218
      %p222 = pneg %p216
      %p223 = scmp.eq.s32.totalorder %s49, 3
      %p224 = por %p222, %p223
      %p225 = scmp.ne.s32.totalorder %s217, %s220
      %p226 = scmp.eq.s32.totalorder %s49, 0
      %p227 = por %p225, %p226
      %p228 = scmp.ne.s32.totalorder %s217, %s220
      %p229 = scmp.eq.s32.totalorder %s54, 3
      %p230 = por %p228, %p229
      %p231 = scmp.ne.s32.totalorder %s220, %s221
      %p232 = scmp.eq.s32.totalorder %s54, 0
      %p233 = por %p231, %p232
      %p234 = scmp.ne.s32.totalorder %s220, %s221
      %p235 = scmp.eq.s32.totalorder %s55, 3
      %p236 = por %p234, %p235
      %p238 = scmp.ne.s32.totalorder %s221, %s237
      %p239 = scmp.eq.s32.totalorder %s55, 0
      %p240 = por %p238, %p239
      %s241 = ssub.s32 %s57, %s64
      %p242 = scmp.eq.s32.totalorder %s241, 0
      %s244 = sadd.s32 %s243, 1
      %s245 = scalar_select %p242, %s243, %s244
      %p248 = pneg %p242
      %p249 = scmp.eq.s32.totalorder %s49, 3
      %p250 = por %p248, %p249
      %p251 = scmp.ne.s32.totalorder %s243, %s246
      %p252 = scmp.eq.s32.totalorder %s49, 0
      %p253 = por %p251, %p252
      %p254 = scmp.ne.s32.totalorder %s243, %s246
      %p255 = scmp.eq.s32.totalorder %s54, 3
      %p256 = por %p254, %p255
      %p257 = scmp.ne.s32.totalorder %s246, %s247
      %p258 = scmp.eq.s32.totalorder %s54, 0
      %p259 = por %p257, %p258
      %p260 = scmp.ne.s32.totalorder %s246, %s247
      %p261 = scmp.eq.s32.totalorder %s55, 3
      %p262 = por %p260, %p261
      %p264 = scmp.ne.s32.totalorder %s247, %s263
      %p265 = scmp.eq.s32.totalorder %s55, 0
      %p266 = por %p264, %p265
      %s267 = ssub.s32 %s57, %s64
      %p268 = scmp.eq.s32.totalorder %s267, 0
      %s270 = sadd.s32 %s269, 1
      %s271 = scalar_select %p268, %s269, %s270
      %p274 = pneg %p268
      %p275 = scmp.eq.s32.totalorder %s49, 3
      %p276 = por %p274, %p275
      %p277 = scmp.ne.s32.totalorder %s269, %s272
      %p278 = scmp.eq.s32.totalorder %s49, 0
      %p279 = por %p277, %p278
      %p280 = scmp.ne.s32.totalorder %s269, %s272
      %p281 = scmp.eq.s32.totalorder %s54, 3
      %p282 = por %p280, %p281
      %p283 = scmp.ne.s32.totalorder %s272, %s273
      %p284 = scmp.eq.s32.totalorder %s54, 0
      %p285 = por %p283, %p284
      %p286 = scmp.ne.s32.totalorder %s272, %s273
      %p287 = scmp.eq.s32.totalorder %s55, 3
      %p288 = por %p286, %p287
      %p290 = scmp.ne.s32.totalorder %s273, %s289
      %p291 = scmp.eq.s32.totalorder %s55, 0
      %p292 = por %p290, %p291
      %s293 = ssub.s32 %s57, %s64
      %p294 = scmp.eq.s32.totalorder %s293, 0
      %s296 = sadd.s32 %s295, 1
      %s297 = scalar_select %p294, %s295, %s296
      %p300 = pneg %p294
      %p301 = scmp.eq.s32.totalorder %s49, 3
      %p302 = por %p300, %p301
      %p303 = scmp.ne.s32.totalorder %s295, %s298
      %p304 = scmp.eq.s32.totalorder %s49, 0
      %p305 = por %p303, %p304
      %p306 = scmp.ne.s32.totalorder %s295, %s298
      %p307 = scmp.eq.s32.totalorder %s54, 3
      %p308 = por %p306, %p307
      %p309 = scmp.ne.s32.totalorder %s298, %s299
      %p310 = scmp.eq.s32.totalorder %s54, 0
      %p311 = por %p309, %p310
      %p312 = scmp.ne.s32.totalorder %s298, %s299
      %p313 = scmp.eq.s32.totalorder %s55, 3
      %p314 = por %p312, %p313
      %p316 = scmp.ne.s32.totalorder %s299, %s315
      %p317 = scmp.eq.s32.totalorder %s55, 0
      %p318 = por %p316, %p317
      %s319 = ssub.s32 %s57, %s64
      %p320 = scmp.eq.s32.totalorder %s319, 0
      %s322 = sadd.s32 %s321, 1
      %s323 = scalar_select %p320, %s321, %s322
      %p326 = pneg %p320
      %p327 = scmp.eq.s32.totalorder %s49, 3
      %p328 = por %p326, %p327
      %p329 = scmp.ne.s32.totalorder %s321, %s324
      %p330 = scmp.eq.s32.totalorder %s49, 0
      %p331 = por %p329, %p330
      %p332 = scmp.ne.s32.totalorder %s321, %s324
      %p333 = scmp.eq.s32.totalorder %s54, 3
      %p334 = por %p332, %p333
      %p335 = scmp.ne.s32.totalorder %s324, %s325
      %p336 = scmp.eq.s32.totalorder %s54, 0
      %p337 = por %p335, %p336
      %p338 = scmp.ne.s32.totalorder %s324, %s325
      %p339 = scmp.eq.s32.totalorder %s55, 3
      %p340 = por %p338, %p339
      %p342 = scmp.ne.s32.totalorder %s325, %s341
      %p343 = scmp.eq.s32.totalorder %s55, 0
      %p344 = por %p342, %p343
      %s345 = ssub.s32 %s57, %s64
      %p346 = scmp.eq.s32.totalorder %s345, 0
      %s348 = sadd.s32 %s347, 1
      %s349 = scalar_select %p346, %s347, %s348
      %p352 = pneg %p346
      %p353 = scmp.eq.s32.totalorder %s49, 3
      %p354 = por %p352, %p353
      %p355 = scmp.ne.s32.totalorder %s347, %s350
      %p356 = scmp.eq.s32.totalorder %s49, 0
      %p357 = por %p355, %p356
      %p358 = scmp.ne.s32.totalorder %s347, %s350
      %p359 = scmp.eq.s32.totalorder %s54, 3
      %p360 = por %p358, %p359
      %p361 = scmp.ne.s32.totalorder %s350, %s351
      %p362 = scmp.eq.s32.totalorder %s54, 0
      %p363 = por %p361, %p362
      %p364 = scmp.ne.s32.totalorder %s350, %s351
      %p365 = scmp.eq.s32.totalorder %s55, 3
      %p366 = por %p364, %p365
      %p368 = scmp.ne.s32.totalorder %s351, %s367
      %p369 = scmp.eq.s32.totalorder %s55, 0
      %p370 = por %p368, %p369
      %s371 = ssub.s32 %s57, %s64
      %p372 = scmp.eq.s32.totalorder %s371, 0
      %s374 = sadd.s32 %s373, 1
      %s375 = scalar_select %p372, %s373, %s374
      %p378 = pneg %p372
      %p379 = scmp.eq.s32.totalorder %s49, 3
      %p380 = por %p378, %p379
      %p381 = scmp.ne.s32.totalorder %s373, %s376
      %p382 = scmp.eq.s32.totalorder %s49, 0
      %p383 = por %p381, %p382
      %p384 = scmp.ne.s32.totalorder %s373, %s376
      %p385 = scmp.eq.s32.totalorder %s54, 3
      %p386 = por %p384, %p385
      %p387 = scmp.ne.s32.totalorder %s376, %s377
      %p388 = scmp.eq.s32.totalorder %s54, 0
      %p389 = por %p387, %p388
      %p390 = scmp.ne.s32.totalorder %s376, %s377
      %p391 = scmp.eq.s32.totalorder %s55, 3
      %p392 = por %p390, %p391
      %p394 = scmp.ne.s32.totalorder %s377, %s393
      %p395 = scmp.eq.s32.totalorder %s55, 0
      %p396 = por %p394, %p395
      %s397 = ssub.s32 %s57, %s64
      %p398 = scmp.eq.s32.totalorder %s397, 0
      %s400 = sadd.s32 %s399, 1
      %s401 = scalar_select %p398, %s399, %s400
      %p404 = pneg %p398
      %p405 = scmp.eq.s32.totalorder %s49, 3
      %p406 = por %p404, %p405
      %p407 = scmp.ne.s32.totalorder %s399, %s402
      %p408 = scmp.eq.s32.totalorder %s49, 0
      %p409 = por %p407, %p408
      %p410 = scmp.ne.s32.totalorder %s399, %s402
      %p411 = scmp.eq.s32.totalorder %s54, 3
      %p412 = por %p410, %p411
      %p413 = scmp.ne.s32.totalorder %s402, %s403
      %p414 = scmp.eq.s32.totalorder %s54, 0
      %p415 = por %p413, %p414
      %p416 = scmp.ne.s32.totalorder %s402, %s403
      %p417 = scmp.eq.s32.totalorder %s55, 3
      %p418 = por %p416, %p417
      %p420 = scmp.ne.s32.totalorder %s403, %s419
      %p421 = scmp.eq.s32.totalorder %s55, 0
      %p422 = por %p420, %p421
      %s423 = ssub.s32 %s57, %s64
      %p424 = scmp.eq.s32.totalorder %s423, 0
      %s426 = sadd.s32 %s425, 1
      %s427 = scalar_select %p424, %s425, %s426
      %p430 = pneg %p424
      %p431 = scmp.eq.s32.totalorder %s49, 3
      %p432 = por %p430, %p431
      %p433 = scmp.ne.s32.totalorder %s425, %s428
      %p434 = scmp.eq.s32.totalorder %s49, 0
      %p435 = por %p433, %p434
      %p436 = scmp.ne.s32.totalorder %s425, %s428
      %p437 = scmp.eq.s32.totalorder %s54, 3
      %p438 = por %p436, %p437
      %p439 = scmp.ne.s32.totalorder %s428, %s429
      %p440 = scmp.eq.s32.totalorder %s54, 0
      %p441 = por %p439, %p440
      %p442 = scmp.ne.s32.totalorder %s428, %s429
      %p443 = scmp.eq.s32.totalorder %s55, 3
      %p444 = por %p442, %p443
      %p446 = scmp.ne.s32.totalorder %s429, %s445
      %p447 = scmp.eq.s32.totalorder %s55, 0
      %p448 = por %p446, %p447
      %s450 = sadd.s32 %s449, 1
      %p453 = scmp.eq.s32.totalorder %s49, 3
      %p454 = scmp.ne.s32.totalorder %s449, %s451
      %p455 = scmp.eq.s32.totalorder %s49, 0
      %p456 = por %p454, %p455
      %p457 = scmp.ne.s32.totalorder %s449, %s451
      %p458 = scmp.eq.s32.totalorder %s54, 3
      %p459 = por %p457, %p458
      %p460 = scmp.ne.s32.totalorder %s451, %s452
      %p461 = scmp.eq.s32.totalorder %s54, 0
      %p462 = por %p460, %p461
      %p463 = scmp.ne.s32.totalorder %s451, %s452
      %p464 = scmp.eq.s32.totalorder %s55, 3
      %p465 = por %p463, %p464
      %p467 = scmp.ne.s32.totalorder %s452, %s466
      %p468 = scmp.eq.s32.totalorder %s55, 0
      %p469 = por %p467, %p468
      %s471 = sadd.s32 %s470, 1
      %p474 = scmp.eq.s32.totalorder %s49, 3
      %p475 = scmp.ne.s32.totalorder %s470, %s472
      %p476 = scmp.eq.s32.totalorder %s49, 0
      %p477 = por %p475, %p476
      %p478 = scmp.ne.s32.totalorder %s470, %s472
      %p479 = scmp.eq.s32.totalorder %s54, 3
      %p480 = por %p478, %p479
      %p481 = scmp.ne.s32.totalorder %s472, %s473
      %p482 = scmp.eq.s32.totalorder %s54, 0
      %p483 = por %p481, %p482
      %p484 = scmp.ne.s32.totalorder %s472, %s473
      %p485 = scmp.eq.s32.totalorder %s55, 3
      %p486 = por %p484, %p485
      %p488 = scmp.ne.s32.totalorder %s473, %s487
      %p489 = scmp.eq.s32.totalorder %s55, 0
      %p490 = por %p488, %p489
      %s491 = ssub.s32 %s56, %s68
      %p492 = scmp.eq.s32.totalorder %s491, 0
      %s494 = sadd.s32 %s493, 1
      %s495 = scalar_select %p492, %s493, %s494
      %p498 = pneg %p492
      %p499 = scmp.eq.s32.totalorder %s49, 3
      %p500 = por %p498, %p499
      %p501 = scmp.ne.s32.totalorder %s493, %s496
      %p502 = scmp.eq.s32.totalorder %s49, 0
      %p503 = por %p501, %p502
      %p504 = scmp.ne.s32.totalorder %s493, %s496
      %p505 = scmp.eq.s32.totalorder %s54, 3
      %p506 = por %p504, %p505
      %p507 = scmp.ne.s32.totalorder %s496, %s497
      %p508 = scmp.eq.s32.totalorder %s54, 0
      %p509 = por %p507, %p508
      %p510 = scmp.ne.s32.totalorder %s496, %s497
      %p511 = scmp.eq.s32.totalorder %s55, 3
      %p512 = por %p510, %p511
      %p514 = scmp.ne.s32.totalorder %s497, %s513
      %p515 = scmp.eq.s32.totalorder %s55, 0
      %p516 = por %p514, %p515
      %p517 = scmp.le.s32.totalorder 1, %s49
      %p518 = scmp.lt.s32.totalorder %s49, 5
      %p519 = pnand %p517, %p518
      %p520 = pneg %p519
      // Predicated region
      $region9: #{tpu_custom_call.1} parent=5 // pred_check
        _
      $region10: #{tpu_custom_call.1} parent=5 // pred_check_branch
        %522 = sbr.rel (%p519) target = $region12
      $region11: #{tpu_custom_call.1} parent=5 // pred_region
        %s523 = ssub.s32 %s49, 1
        // Predicated region
        $region13: #{tpu_custom_call.1} parent=11 // pred_check
          %p524 = pneg %p108
        $region14: #{tpu_custom_call.1} parent=11 // pred_check_branch
          %526 = sbr.rel (%p524) target = $region16
        $region15: #{tpu_custom_call.1} parent=11 // pred_region
          %s528 = ssub.s32 2048, 2048
          %529 = vsyncadd [#allocation8], %s528
          %s530 = sshll.u32 [#allocation7], 4
          %s531 = int_to_ptr.vmem [resolvable:$true] %s530
          %536 = dma.hbm_to_vmem [thread:$0]  %s1, 2048, %s531, [#allocation8], 128, 128, 8
        $region16: #{tpu_custom_call.1} parent=11 // pred_fallthru
          _
        // Predicated region
        $region17: #{tpu_custom_call.1} parent=11 // pred_check
          %p537 = pneg %p129
        $region18: #{tpu_custom_call.1} parent=11 // pred_check_branch
          %539 = sbr.rel (%p537) target = $region20
        $region19: #{tpu_custom_call.1} parent=11 // pred_region
          %s541 = ssub.s32 16, 16
          %542 = vsyncadd [#allocation8], %s541
          %s544 = sshll.u32 [#allocation9], 4
          %s545 = int_to_ptr.vmem [resolvable:$true] %s544
          %547 = dma.hbm_to_vmem [thread:$0]  %s2, 16, %s545, [#allocation8]
        $region20: #{tpu_custom_call.1} parent=11 // pred_fallthru
          _
        // Predicated region
        $region21: #{tpu_custom_call.1} parent=11 // pred_check
          %p548 = pneg %p462
        $region22: #{tpu_custom_call.1} parent=11 // pred_check_branch
          %550 = sbr.rel (%p548) target = $region24
        $region23: #{tpu_custom_call.1} parent=11 // pred_region
          %s552 = ssub.s32 1024, 1024
          %553 = vsyncadd [#allocation29], %s552
          %s554 = sshll.u32 [#allocation28], 4
          %s555 = int_to_ptr.vmem [resolvable:$true] %s554
          %560 = dma.hbm_to_vmem [thread:$0]  %s15, 1024, %s555, [#allocation29], 64, 64, 4
        $region24: #{tpu_custom_call.1} parent=11 // pred_fallthru
          _
        // Predicated region
        $region25: #{tpu_custom_call.1} parent=11 // pred_check
          %p561 = pneg %p483
        $region26: #{tpu_custom_call.1} parent=11 // pred_check_branch
          %563 = sbr.rel (%p561) target = $region28
        $region27: #{tpu_custom_call.1} parent=11 // pred_region
          %s565 = ssub.s32 16, 16
          %566 = vsyncadd [#allocation29], %s565
          %s568 = sshll.u32 [#allocation30], 4
          %s569 = int_to_ptr.vmem [resolvable:$true] %s568
          %571 = dma.hbm_to_vmem [thread:$0]  %s16, 16, %s569, [#allocation29]
        $region28: #{tpu_custom_call.1} parent=11 // pred_fallthru
          _
      $region12: #{tpu_custom_call.1} parent=5 // pred_fallthru
        _
      %p572 = scmp.lt.s32.totalorder %s49, 4
      // Predicated region
      $region29: #{tpu_custom_call.1} parent=5 // pred_check
        %p573 = pneg %p572
      $region30: #{tpu_custom_call.1} parent=5 // pred_check_branch
        %575 = sbr.rel (%p573) target = $region32
      $region31: #{tpu_custom_call.1} parent=5 // pred_region
        // Predicated region
        $region33: #{tpu_custom_call.1} parent=31 // pred_check
          %p576 = pneg %p81
        $region34: #{tpu_custom_call.1} parent=31 // pred_check_branch
          %578 = sbr.rel (%p576) target = $region36
        $region35: #{tpu_custom_call.1} parent=31 // pred_region
          %s579 = sand.u32 %s71, 1
          %s580 = scalar_lea.sflag [#allocation5], %s579
          %s581 = sand.u32 %s71, 1
          %s582 = smul.addr %s581, 8
          %s583 = scalar_lea.vmem [#allocation4], %s582
          %s585 = ssub.s32 128, 128
          %586 = vsyncadd %s580, %s585
          %s587 = smul.addr %s56, 128
          %s588 = scalar_lea.hbm %s0, %s587
          %s590 = sshll.u32 %s583, 4
          %s591 = int_to_ptr.vmem [resolvable:$true] %s590
          %593 = dma.hbm_to_vmem [thread:$0]  %s588, 128, %s591, %s580
        $region36: #{tpu_custom_call.1} parent=31 // pred_fallthru
          _
        // Predicated region
        $region37: #{tpu_custom_call.1} parent=31 // pred_check
          %p594 = pneg %p149
        $region38: #{tpu_custom_call.1} parent=31 // pred_check_branch
          %596 = sbr.rel (%p594) target = $region40
        $region39: #{tpu_custom_call.1} parent=31 // pred_region
          %s597 = sand.u32 %s49, 1
          %s598 = scalar_lea.sflag [#allocation11], %s597
          %s599 = sand.u32 %s139, 1
          %s600 = smul.addr %s599, 192
          %s601 = scalar_lea.vmem [#allocation10], %s600
          %s603 = ssub.s32 3072, 3072
          %604 = vsyncadd %s598, %s603
          %s605 = smul.addr %s57, 48
          %s606 = smul.addr %s605, 64
          %s607 = scalar_lea.hbm %s3, %s606
          %s608 = sshll.u32 %s601, 4
          %s609 = int_to_ptr.vmem [resolvable:$true] %s608
          %614 = dma.hbm_to_vmem [thread:$0]  %s607, 3072, %s609, %s598, 192, 192, 12
        $region40: #{tpu_custom_call.1} parent=31 // pred_fallthru
          _
        // Predicated region
        $region41: #{tpu_custom_call.1} parent=31 // pred_check
          %p615 = pneg %p175
        $region42: #{tpu_custom_call.1} parent=31 // pred_check_branch
          %617 = sbr.rel (%p615) target = $region44
        $region43: #{tpu_custom_call.1} parent=31 // pred_region
          %s618 = sand.u32 %s49, 1
          %s619 = scalar_lea.sflag [#allocation11], %s618
          %s620 = sand.u32 %s165, 1
          %s621 = smul.addr %s620, 3
          %s622 = scalar_lea.vmem [#allocation12], %s621
          %s624 = ssub.s32 48, 48
          %625 = vsyncadd %s619, %s624
          %s626 = smul.addr %s57, 3
          %s627 = smul.addr %s626, 16
          %s628 = scalar_lea.hbm %s4, %s627
          %s630 = sshll.u32 %s622, 4
          %s631 = int_to_ptr.vmem [resolvable:$true] %s630
          %633 = dma.hbm_to_vmem [thread:$0]  %s628, 48, %s631, %s619
        $region44: #{tpu_custom_call.1} parent=31 // pred_fallthru
          _
        // Predicated region
        $region45: #{tpu_custom_call.1} parent=31 // pred_check
          %p634 = pneg %p201
        $region46: #{tpu_custom_call.1} parent=31 // pred_check_branch
          %636 = sbr.rel (%p634) target = $region48
        $region47: #{tpu_custom_call.1} parent=31 // pred_region
          %s637 = sand.u32 %s49, 1
          %s638 = scalar_lea.sflag [#allocation14], %s637
          %s639 = sand.u32 %s191, 1
          %s640 = smul.addr %s639, 64
          %s641 = scalar_lea.vmem [#allocation13], %s640
          %s643 = ssub.s32 1024, 1024
          %644 = vsyncadd %s638, %s643
          %s645 = smul.addr %s57, 16
          %s646 = smul.addr %s645, 64
          %s647 = scalar_lea.hbm %s5, %s646
          %s648 = sshll.u32 %s641, 4
          %s649 = int_to_ptr.vmem [resolvable:$true] %s648
          %654 = dma.hbm_to_vmem [thread:$0]  %s647, 1024, %s649, %s638, 64, 64, 4
        $region48: #{tpu_custom_call.1} parent=31 // pred_fallthru
          _
        // Predicated region
        $region49: #{tpu_custom_call.1} parent=31 // pred_check
          %p655 = pneg %p227
        $region50: #{tpu_custom_call.1} parent=31 // pred_check_branch
          %657 = sbr.rel (%p655) target = $region52
        $region51: #{tpu_custom_call.1} parent=31 // pred_region
          %s658 = sand.u32 %s49, 1
          %s659 = scalar_lea.sflag [#allocation14], %s658
          %s660 = sand.u32 %s217, 1
          %s661 = scalar_lea.vmem [#allocation15], %s660
          %s663 = ssub.s32 16, 16
          %664 = vsyncadd %s659, %s663
          %s665 = smul.addr %s57, 16
          %s666 = scalar_lea.hbm %s6, %s665
          %s668 = sshll.u32 %s661, 4
          %s669 = int_to_ptr.vmem [resolvable:$true] %s668
          %671 = dma.hbm_to_vmem [thread:$0]  %s666, 16, %s669, %s659
        $region52: #{tpu_custom_call.1} parent=31 // pred_fallthru
          _
        // Predicated region
        $region53: #{tpu_custom_call.1} parent=31 // pred_check
          %p672 = pneg %p253
        $region54: #{tpu_custom_call.1} parent=31 // pred_check_branch
          %674 = sbr.rel (%p672) target = $region56
        $region55: #{tpu_custom_call.1} parent=31 // pred_region
          %s675 = sand.u32 %s49, 1
          %s676 = scalar_lea.sflag [#allocation17], %s675
          %s677 = sand.u32 %s243, 1
          %s678 = scalar_lea.vmem [#allocation16], %s677
          %s680 = ssub.s32 16, 16
          %681 = vsyncadd %s676, %s680
          %s682 = smul.addr %s57, 16
          %s683 = scalar_lea.hbm %s7, %s682
          %s685 = sshll.u32 %s678, 4
          %s686 = int_to_ptr.vmem [resolvable:$true] %s685
          %688 = dma.hbm_to_vmem [thread:$0]  %s683, 16, %s686, %s676
        $region56: #{tpu_custom_call.1} parent=31 // pred_fallthru
          _
        // Predicated region
        $region57: #{tpu_custom_call.1} parent=31 // pred_check
          %p689 = pneg %p279
        $region58: #{tpu_custom_call.1} parent=31 // pred_check_branch
          %691 = sbr.rel (%p689) target = $region60
        $region59: #{tpu_custom_call.1} parent=31 // pred_region
          %s692 = sand.u32 %s49, 1
          %s693 = scalar_lea.sflag [#allocation17], %s692
          %s694 = sand.u32 %s269, 1
          %s695 = scalar_lea.vmem [#allocation18], %s694
          %s697 = ssub.s32 16, 16
          %698 = vsyncadd %s693, %s697
          %s699 = smul.addr %s57, 16
          %s700 = scalar_lea.hbm %s8, %s699
          %s702 = sshll.u32 %s695, 4
          %s703 = int_to_ptr.vmem [resolvable:$true] %s702
          %705 = dma.hbm_to_vmem [thread:$0]  %s700, 16, %s703, %s693
        $region60: #{tpu_custom_call.1} parent=31 // pred_fallthru
          _
        // Predicated region
        $region61: #{tpu_custom_call.1} parent=31 // pred_check
          %p706 = pneg %p305
        $region62: #{tpu_custom_call.1} parent=31 // pred_check_branch
          %708 = sbr.rel (%p706) target = $region64
        $region63: #{tpu_custom_call.1} parent=31 // pred_region
          %s709 = sand.u32 %s49, 1
          %s710 = scalar_lea.sflag [#allocation20], %s709
          %s711 = sand.u32 %s295, 1
          %s712 = smul.addr %s711, 128
          %s713 = scalar_lea.vmem [#allocation19], %s712
          %s715 = ssub.s32 2048, 2048
          %716 = vsyncadd %s710, %s715
          %s717 = smul.addr %s57, 32
          %s718 = smul.addr %s717, 64
          %s719 = scalar_lea.hbm %s9, %s718
          %s720 = sshll.u32 %s713, 4
          %s721 = int_to_ptr.vmem [resolvable:$true] %s720
          %726 = dma.hbm_to_vmem [thread:$0]  %s719, 2048, %s721, %s710, 128, 128, 8
        $region64: #{tpu_custom_call.1} parent=31 // pred_fallthru
          _
        // Predicated region
        $region65: #{tpu_custom_call.1} parent=31 // pred_check
          %p727 = pneg %p331
        $region66: #{tpu_custom_call.1} parent=31 // pred_check_branch
          %729 = sbr.rel (%p727) target = $region68
        $region67: #{tpu_custom_call.1} parent=31 // pred_region
          %s730 = sand.u32 %s49, 1
          %s731 = scalar_lea.sflag [#allocation20], %s730
          %s732 = sand.u32 %s321, 1
          %s733 = smul.addr %s732, 2
          %s734 = scalar_lea.vmem [#allocation21], %s733
          %s736 = ssub.s32 32, 32
          %737 = vsyncadd %s731, %s736
          %s738 = smul.addr %s57, 2
          %s739 = smul.addr %s738, 16
          %s740 = scalar_lea.hbm %s10, %s739
          %s742 = sshll.u32 %s734, 4
          %s743 = int_to_ptr.vmem [resolvable:$true] %s742
          %745 = dma.hbm_to_vmem [thread:$0]  %s740, 32, %s743, %s731
        $region68: #{tpu_custom_call.1} parent=31 // pred_fallthru
          _
        // Predicated region
        $region69: #{tpu_custom_call.1} parent=31 // pred_check
          %p746 = pneg %p357
        $region70: #{tpu_custom_call.1} parent=31 // pred_check_branch
          %748 = sbr.rel (%p746) target = $region72
        $region71: #{tpu_custom_call.1} parent=31 // pred_region
          %s749 = sand.u32 %s49, 1
          %s750 = scalar_lea.sflag [#allocation23], %s749
          %s751 = sand.u32 %s347, 1
          %s752 = smul.addr %s751, 128
          %s753 = scalar_lea.vmem [#allocation22], %s752
          %s755 = ssub.s32 2048, 2048
          %756 = vsyncadd %s750, %s755
          %s757 = smul.addr %s57, 32
          %s758 = smul.addr %s757, 64
          %s759 = scalar_lea.hbm %s11, %s758
          %s760 = sshll.u32 %s753, 4
          %s761 = int_to_ptr.vmem [resolvable:$true] %s760
          %766 = dma.hbm_to_vmem [thread:$0]  %s759, 2048, %s761, %s750, 64, 64, 4
        $region72: #{tpu_custom_call.1} parent=31 // pred_fallthru
          _
        // Predicated region
        $region73: #{tpu_custom_call.1} parent=31 // pred_check
          %p767 = pneg %p383
        $region74: #{tpu_custom_call.1} parent=31 // pred_check_branch
          %769 = sbr.rel (%p767) target = $region76
        $region75: #{tpu_custom_call.1} parent=31 // pred_region
          %s770 = sand.u32 %s49, 1
          %s771 = scalar_lea.sflag [#allocation23], %s770
          %s772 = sand.u32 %s373, 1
          %s773 = scalar_lea.vmem [#allocation24], %s772
          %s775 = ssub.s32 16, 16
          %776 = vsyncadd %s771, %s775
          %s777 = smul.addr %s57, 16
          %s778 = scalar_lea.hbm %s12, %s777
          %s780 = sshll.u32 %s773, 4
          %s781 = int_to_ptr.vmem [resolvable:$true] %s780
          %783 = dma.hbm_to_vmem [thread:$0]  %s778, 16, %s781, %s771
        $region76: #{tpu_custom_call.1} parent=31 // pred_fallthru
          _
        // Predicated region
        $region77: #{tpu_custom_call.1} parent=31 // pred_check
          %p784 = pneg %p409
        $region78: #{tpu_custom_call.1} parent=31 // pred_check_branch
          %786 = sbr.rel (%p784) target = $region80
        $region79: #{tpu_custom_call.1} parent=31 // pred_region
          %s787 = sand.u32 %s49, 1
          %s788 = scalar_lea.sflag [#allocation26], %s787
          %s789 = sand.u32 %s399, 1
          %s790 = scalar_lea.vmem [#allocation25], %s789
          %s792 = ssub.s32 16, 16
          %793 = vsyncadd %s788, %s792
          %s794 = smul.addr %s57, 16
          %s795 = scalar_lea.hbm %s13, %s794
          %s797 = sshll.u32 %s790, 4
          %s798 = int_to_ptr.vmem [resolvable:$true] %s797
          %800 = dma.hbm_to_vmem [thread:$0]  %s795, 16, %s798, %s788
        $region80: #{tpu_custom_call.1} parent=31 // pred_fallthru
          _
        // Predicated region
        $region81: #{tpu_custom_call.1} parent=31 // pred_check
          %p801 = pneg %p435
        $region82: #{tpu_custom_call.1} parent=31 // pred_check_branch
          %803 = sbr.rel (%p801) target = $region84
        $region83: #{tpu_custom_call.1} parent=31 // pred_region
          %s804 = sand.u32 %s49, 1
          %s805 = scalar_lea.sflag [#allocation26], %s804
          %s806 = sand.u32 %s425, 1
          %s807 = scalar_lea.vmem [#allocation27], %s806
          %s809 = ssub.s32 16, 16
          %810 = vsyncadd %s805, %s809
          %s811 = smul.addr %s57, 16
          %s812 = scalar_lea.hbm %s14, %s811
          %s814 = sshll.u32 %s807, 4
          %s815 = int_to_ptr.vmem [resolvable:$true] %s814
          %817 = dma.hbm_to_vmem [thread:$0]  %s812, 16, %s815, %s805
        $region84: #{tpu_custom_call.1} parent=31 // pred_fallthru
          _
      $region32: #{tpu_custom_call.1} parent=5 // pred_fallthru
        _
      %p818 = scmp.le.s32.totalorder 1, %s49
      %p819 = scmp.lt.s32.totalorder %s49, 5
      %p820 = pnand %p818, %p819
      %p821 = pneg %p820
      // Predicated region
      $region85: #{tpu_custom_call.1} parent=5 // pred_check
        _
      $region86: #{tpu_custom_call.1} parent=5 // pred_check_branch
        %823 = sbr.rel (%p820) target = $region88
      $region87: #{tpu_custom_call.1} parent=5 // pred_region
        %s824 = ssub.s32 %s49, 1
        %s825 = sand.u32 %s74, 1
        %s826 = scalar_lea.sflag [#allocation5], %s825
        %s827 = sand.u32 %s74, 1
        %s828 = smul.addr %s827, 8
        %s829 = scalar_lea.vmem [#allocation4], %s828
        // Predicated region
        $region89: #{tpu_custom_call.1} parent=87 // pred_check
          %p830 = pneg %p87
        $region90: #{tpu_custom_call.1} parent=87 // pred_check_branch
          %832 = sbr.rel (%p830) target = $region92
        $region91: #{tpu_custom_call.1} parent=87 // pred_region
          %833 = dma.done %s826, 128
        $region92: #{tpu_custom_call.1} parent=87 // pred_fallthru
          _
        // Predicated region
        $region93: #{tpu_custom_call.1} parent=87 // pred_check
          %p834 = pneg %p108
        $region94: #{tpu_custom_call.1} parent=87 // pred_check_branch
          %836 = sbr.rel (%p834) target = $region96
        $region95: #{tpu_custom_call.1} parent=87 // pred_region
          %837 = dma.done [#allocation8], 2048
        $region96: #{tpu_custom_call.1} parent=87 // pred_fallthru
          _
        // Predicated region
        $region97: #{tpu_custom_call.1} parent=87 // pred_check
          %p838 = pneg %p129
        $region98: #{tpu_custom_call.1} parent=87 // pred_check_branch
          %840 = sbr.rel (%p838) target = $region100
        $region99: #{tpu_custom_call.1} parent=87 // pred_region
          %841 = dma.done [#allocation8], 16
        $region100: #{tpu_custom_call.1} parent=87 // pred_fallthru
          _
        %s842 = sand.u32 %s54, 1
        %s843 = scalar_lea.sflag [#allocation11], %s842
        %s844 = sand.u32 %s142, 1
        %s845 = smul.addr %s844, 192
        %s846 = scalar_lea.vmem [#allocation10], %s845
        // Predicated region
        $region101: #{tpu_custom_call.1} parent=87 // pred_check
          %p847 = pneg %p155
        $region102: #{tpu_custom_call.1} parent=87 // pred_check_branch
          %849 = sbr.rel (%p847) target = $region104
        $region103: #{tpu_custom_call.1} parent=87 // pred_region
          %850 = dma.done %s843, 3072
        $region104: #{tpu_custom_call.1} parent=87 // pred_fallthru
          _
        %s851 = sand.u32 %s54, 1
        %s852 = scalar_lea.sflag [#allocation11], %s851
        %s853 = sand.u32 %s168, 1
        %s854 = smul.addr %s853, 3
        %s855 = scalar_lea.vmem [#allocation12], %s854
        // Predicated region
        $region105: #{tpu_custom_call.1} parent=87 // pred_check
          %p856 = pneg %p181
        $region106: #{tpu_custom_call.1} parent=87 // pred_check_branch
          %858 = sbr.rel (%p856) target = $region108
        $region107: #{tpu_custom_call.1} parent=87 // pred_region
          %859 = dma.done %s852, 48
        $region108: #{tpu_custom_call.1} parent=87 // pred_fallthru
          _
        %s860 = sand.u32 %s54, 1
        %s861 = scalar_lea.sflag [#allocation14], %s860
        %s862 = sand.u32 %s194, 1
        %s863 = smul.addr %s862, 64
        %s864 = scalar_lea.vmem [#allocation13], %s863
        // Predicated region
        $region109: #{tpu_custom_call.1} parent=87 // pred_check
          %p865 = pneg %p207
        $region110: #{tpu_custom_call.1} parent=87 // pred_check_branch
          %867 = sbr.rel (%p865) target = $region112
        $region111: #{tpu_custom_call.1} parent=87 // pred_region
          %868 = dma.done %s861, 1024
        $region112: #{tpu_custom_call.1} parent=87 // pred_fallthru
          _
        %s869 = sand.u32 %s54, 1
        %s870 = scalar_lea.sflag [#allocation14], %s869
        %s871 = sand.u32 %s220, 1
        %s872 = scalar_lea.vmem [#allocation15], %s871
        // Predicated region
        $region113: #{tpu_custom_call.1} parent=87 // pred_check
          %p873 = pneg %p233
        $region114: #{tpu_custom_call.1} parent=87 // pred_check_branch
          %875 = sbr.rel (%p873) target = $region116
        $region115: #{tpu_custom_call.1} parent=87 // pred_region
          %876 = dma.done %s870, 16
        $region116: #{tpu_custom_call.1} parent=87 // pred_fallthru
          _
        %s877 = sand.u32 %s54, 1
        %s878 = scalar_lea.sflag [#allocation17], %s877
        %s879 = sand.u32 %s246, 1
        %s880 = scalar_lea.vmem [#allocation16], %s879
        // Predicated region
        $region117: #{tpu_custom_call.1} parent=87 // pred_check
          %p881 = pneg %p259
        $region118: #{tpu_custom_call.1} parent=87 // pred_check_branch
          %883 = sbr.rel (%p881) target = $region120
        $region119: #{tpu_custom_call.1} parent=87 // pred_region
          %884 = dma.done %s878, 16
        $region120: #{tpu_custom_call.1} parent=87 // pred_fallthru
          _
        %s885 = sand.u32 %s54, 1
        %s886 = scalar_lea.sflag [#allocation17], %s885
        %s887 = sand.u32 %s272, 1
        %s888 = scalar_lea.vmem [#allocation18], %s887
        // Predicated region
        $region121: #{tpu_custom_call.1} parent=87 // pred_check
          %p889 = pneg %p285
        $region122: #{tpu_custom_call.1} parent=87 // pred_check_branch
          %891 = sbr.rel (%p889) target = $region124
        $region123: #{tpu_custom_call.1} parent=87 // pred_region
          %892 = dma.done %s886, 16
        $region124: #{tpu_custom_call.1} parent=87 // pred_fallthru
          _
        %s893 = sand.u32 %s54, 1
        %s894 = scalar_lea.sflag [#allocation20], %s893
        %s895 = sand.u32 %s298, 1
        %s896 = smul.addr %s895, 128
        %s897 = scalar_lea.vmem [#allocation19], %s896
        // Predicated region
        $region125: #{tpu_custom_call.1} parent=87 // pred_check
          %p898 = pneg %p311
        $region126: #{tpu_custom_call.1} parent=87 // pred_check_branch
          %900 = sbr.rel (%p898) target = $region128
        $region127: #{tpu_custom_call.1} parent=87 // pred_region
          %901 = dma.done %s894, 2048
        $region128: #{tpu_custom_call.1} parent=87 // pred_fallthru
          _
        %s902 = sand.u32 %s54, 1
        %s903 = scalar_lea.sflag [#allocation20], %s902
        %s904 = sand.u32 %s324, 1
        %s905 = smul.addr %s904, 2
        %s906 = scalar_lea.vmem [#allocation21], %s905
        // Predicated region
        $region129: #{tpu_custom_call.1} parent=87 // pred_check
          %p907 = pneg %p337
        $region130: #{tpu_custom_call.1} parent=87 // pred_check_branch
          %909 = sbr.rel (%p907) target = $region132
        $region131: #{tpu_custom_call.1} parent=87 // pred_region
          %910 = dma.done %s903, 32
        $region132: #{tpu_custom_call.1} parent=87 // pred_fallthru
          _
        %s911 = sand.u32 %s54, 1
        %s912 = scalar_lea.sflag [#allocation23], %s911
        %s913 = sand.u32 %s350, 1
        %s914 = smul.addr %s913, 128
        %s915 = scalar_lea.vmem [#allocation22], %s914
        // Predicated region
        $region133: #{tpu_custom_call.1} parent=87 // pred_check
          %p916 = pneg %p363
        $region134: #{tpu_custom_call.1} parent=87 // pred_check_branch
          %918 = sbr.rel (%p916) target = $region136
        $region135: #{tpu_custom_call.1} parent=87 // pred_region
          %919 = dma.done %s912, 2048
        $region136: #{tpu_custom_call.1} parent=87 // pred_fallthru
          _
        %s920 = sand.u32 %s54, 1
        %s921 = scalar_lea.sflag [#allocation23], %s920
        %s922 = sand.u32 %s376, 1
        %s923 = scalar_lea.vmem [#allocation24], %s922
        // Predicated region
        $region137: #{tpu_custom_call.1} parent=87 // pred_check
          %p924 = pneg %p389
        $region138: #{tpu_custom_call.1} parent=87 // pred_check_branch
          %926 = sbr.rel (%p924) target = $region140
        $region139: #{tpu_custom_call.1} parent=87 // pred_region
          %927 = dma.done %s921, 16
        $region140: #{tpu_custom_call.1} parent=87 // pred_fallthru
          _
        %s928 = sand.u32 %s54, 1
        %s929 = scalar_lea.sflag [#allocation26], %s928
        %s930 = sand.u32 %s402, 1
        %s931 = scalar_lea.vmem [#allocation25], %s930
        // Predicated region
        $region141: #{tpu_custom_call.1} parent=87 // pred_check
          %p932 = pneg %p415
        $region142: #{tpu_custom_call.1} parent=87 // pred_check_branch
          %934 = sbr.rel (%p932) target = $region144
        $region143: #{tpu_custom_call.1} parent=87 // pred_region
          %935 = dma.done %s929, 16
        $region144: #{tpu_custom_call.1} parent=87 // pred_fallthru
          _
        %s936 = sand.u32 %s54, 1
        %s937 = scalar_lea.sflag [#allocation26], %s936
        %s938 = sand.u32 %s428, 1
        %s939 = scalar_lea.vmem [#allocation27], %s938
        // Predicated region
        $region145: #{tpu_custom_call.1} parent=87 // pred_check
          %p940 = pneg %p441
        $region146: #{tpu_custom_call.1} parent=87 // pred_check_branch
          %942 = sbr.rel (%p940) target = $region148
        $region147: #{tpu_custom_call.1} parent=87 // pred_region
          %943 = dma.done %s937, 16
        $region148: #{tpu_custom_call.1} parent=87 // pred_fallthru
          _
        // Predicated region
        $region149: #{tpu_custom_call.1} parent=87 // pred_check
          %p944 = pneg %p462
        $region150: #{tpu_custom_call.1} parent=87 // pred_check_branch
          %946 = sbr.rel (%p944) target = $region152
        $region151: #{tpu_custom_call.1} parent=87 // pred_region
          %947 = dma.done [#allocation29], 1024
        $region152: #{tpu_custom_call.1} parent=87 // pred_fallthru
          _
        // Predicated region
        $region153: #{tpu_custom_call.1} parent=87 // pred_check
          %p948 = pneg %p483
        $region154: #{tpu_custom_call.1} parent=87 // pred_check_branch
          %950 = sbr.rel (%p948) target = $region156
        $region155: #{tpu_custom_call.1} parent=87 // pred_region
          %951 = dma.done [#allocation29], 16
        $region156: #{tpu_custom_call.1} parent=87 // pred_fallthru
          _
        %s952 = sand.u32 %s74, 1
        %s953 = scalar_lea.sflag [#allocation5], %s952
        %s954 = sand.u32 %s74, 1
        %s955 = smul.addr %s954, 8
        %s956 = scalar_lea.vmem [#allocation4], %s955
        %p957 = pneg %p87
        %p958 = pneg %p84
        %p959 = pneg %p108
        %p960 = pneg %p105
        %p961 = pneg %p129
        %p962 = pneg %p126
        %s963 = sand.u32 %s54, 1
        %s964 = scalar_lea.sflag [#allocation11], %s963
        %s965 = sand.u32 %s142, 1
        %s966 = smul.addr %s965, 192
        %s967 = scalar_lea.vmem [#allocation10], %s966
        %p968 = pneg %p155
        %p969 = pneg %p152
        %s970 = sand.u32 %s54, 1
        %s971 = scalar_lea.sflag [#allocation11], %s970
        %s972 = sand.u32 %s168, 1
        %s973 = smul.addr %s972, 3
        %s974 = scalar_lea.vmem [#allocation12], %s973
        %p975 = pneg %p181
        %p976 = pneg %p178
        %s977 = sand.u32 %s54, 1
        %s978 = scalar_lea.sflag [#allocation14], %s977
        %s979 = sand.u32 %s194, 1
        %s980 = smul.addr %s979, 64
        %s981 = scalar_lea.vmem [#allocation13], %s980
        %p982 = pneg %p207
        %p983 = pneg %p204
        %s984 = sand.u32 %s54, 1
        %s985 = scalar_lea.sflag [#allocation14], %s984
        %s986 = sand.u32 %s220, 1
        %s987 = scalar_lea.vmem [#allocation15], %s986
        %p988 = pneg %p233
        %p989 = pneg %p230
        %s990 = sand.u32 %s54, 1
        %s991 = scalar_lea.sflag [#allocation17], %s990
        %s992 = sand.u32 %s246, 1
        %s993 = scalar_lea.vmem [#allocation16], %s992
        %p994 = pneg %p259
        %p995 = pneg %p256
        %s996 = sand.u32 %s54, 1
        %s997 = scalar_lea.sflag [#allocation17], %s996
        %s998 = sand.u32 %s272, 1
        %s999 = scalar_lea.vmem [#allocation18], %s998
        %p1000 = pneg %p285
        %p1001 = pneg %p282
        %s1002 = sand.u32 %s54, 1
        %s1003 = scalar_lea.sflag [#allocation20], %s1002
        %s1004 = sand.u32 %s298, 1
        %s1005 = smul.addr %s1004, 128
        %s1006 = scalar_lea.vmem [#allocation19], %s1005
        %p1007 = pneg %p311
        %p1008 = pneg %p308
        %s1009 = sand.u32 %s54, 1
        %s1010 = scalar_lea.sflag [#allocation20], %s1009
        %s1011 = sand.u32 %s324, 1
        %s1012 = smul.addr %s1011, 2
        %s1013 = scalar_lea.vmem [#allocation21], %s1012
        %p1014 = pneg %p337
        %p1015 = pneg %p334
        %s1016 = sand.u32 %s54, 1
        %s1017 = scalar_lea.sflag [#allocation23], %s1016
        %s1018 = sand.u32 %s350, 1
        %s1019 = smul.addr %s1018, 128
        %s1020 = scalar_lea.vmem [#allocation22], %s1019
        %p1021 = pneg %p363
        %p1022 = pneg %p360
        %s1023 = sand.u32 %s54, 1
        %s1024 = scalar_lea.sflag [#allocation23], %s1023
        %s1025 = sand.u32 %s376, 1
        %s1026 = scalar_lea.vmem [#allocation24], %s1025
        %p1027 = pneg %p389
        %p1028 = pneg %p386
        %s1029 = sand.u32 %s54, 1
        %s1030 = scalar_lea.sflag [#allocation26], %s1029
        %s1031 = sand.u32 %s402, 1
        %s1032 = scalar_lea.vmem [#allocation25], %s1031
        %p1033 = pneg %p415
        %p1034 = pneg %p412
        %s1035 = sand.u32 %s54, 1
        %s1036 = scalar_lea.sflag [#allocation26], %s1035
        %s1037 = sand.u32 %s428, 1
        %s1038 = scalar_lea.vmem [#allocation27], %s1037
        %p1039 = pneg %p441
        %p1040 = pneg %p438
        %p1041 = pneg %p462
        %p1042 = pneg %p459
        %p1043 = pneg %p483
        %p1044 = pneg %p480
        %p1045 = pneg %p509
        %p1046 = pneg %p506
        %s1047 = sand.u32 %s496, 1
        %s1048 = scalar_lea.sflag [#allocation6], %s1047
        %s1049 = sand.u32 %s496, 1
        %s1050 = smul.addr %s1049, 8
        %s1051 = scalar_lea.vmem [#allocation31], %s1050
        %p1053 = scmp.eq.s32.totalorder %s59, 0
        // Predicated region
        $region157: #{tpu_custom_call.1} parent=87 // pred_check
          %p1054 = pneg %p1053
        $region158: #{tpu_custom_call.1} parent=87 // pred_check_branch
          %1056 = sbr.rel (%p1054) target = $region160
        $region159: #{tpu_custom_call.1} parent=87 // pred_region
          %v1057 = vld [vmem:[%s829] sm:$0xff]
          %v1058 = vld [vmem:[#allocation7] sm:$0xff]
          %v1059 = vld [vmem:[#allocation7 + $0x8] sm:$0xff]
          %v1060 = vld [vmem:[#allocation7 + $0x10] sm:$0xff]
          %v1061 = vld [vmem:[#allocation7 + $0x18] sm:$0xff]
          %v1062 = vld [vmem:[#allocation7 + $0x20] sm:$0xff]
          %v1063 = vld [vmem:[#allocation7 + $0x28] sm:$0xff]
          %v1064 = vld [vmem:[#allocation7 + $0x30] sm:$0xff]
          %v1065 = vld [vmem:[#allocation7 + $0x38] sm:$0xff]
          %v1066 = vld [vmem:[#allocation7 + $0x40] sm:$0xff]
          %v1067 = vld [vmem:[#allocation7 + $0x48] sm:$0xff]
          %v1068 = vld [vmem:[#allocation7 + $0x50] sm:$0xff]
          %v1069 = vld [vmem:[#allocation7 + $0x58] sm:$0xff]
          %v1070 = vld [vmem:[#allocation7 + $0x60] sm:$0xff]
          %v1071 = vld [vmem:[#allocation7 + $0x68] sm:$0xff]
          %v1072 = vld [vmem:[#allocation7 + $0x70] sm:$0xff]
          %v1073 = vld [vmem:[#allocation7 + $0x78] sm:$0xff]
          %v1074 = vld [vmem:[#allocation9] sm:$0x1]
          %v1076 = vlaneseq
          %v1077 = vshrl.u32 %v1076, 7
          %v1078 = vsub.s32 0, %v1077
          %v1079 = vrot.slane %v1074, %v1078
          %1081 = vmatprep.subr.mxu0 0.0
          %1082 = vmatpush1.msra.mxu0 %v1058
          %1083 = vmatprep.subr.mxu0 0.0
          %1084 = vmatpush1.msra.mxu0 %v1059
          %1085 = vmatprep.subr.mxu0 0.0
          %1086 = vmatpush1.msra.mxu0 %v1060
          %1087 = vmatprep.subr.mxu0 0.0
          %1088 = vmatpush1.msra.mxu0 %v1061
          %1089 = vmatprep.subr.mxu0 0.0
          %1090 = vmatpush1.msra.mxu0 %v1062
          %1091 = vmatprep.subr.mxu0 0.0
          %1092 = vmatpush1.msra.mxu0 %v1063
          %1093 = vmatprep.subr.mxu0 0.0
          %1094 = vmatpush1.msra.mxu0 %v1064
          %1095 = vmatprep.subr.mxu0 0.0
          %1096 = vmatpush1.msra.mxu0 %v1065
          %1097 = vmatprep.subr.mxu0 0.0
          %1098 = vmatpush1.msra.mxu0 %v1066
          %1099 = vmatprep.subr.mxu0 0.0
          %1100 = vmatpush1.msra.mxu0 %v1067
          %1101 = vmatprep.subr.mxu0 0.0
          %1102 = vmatpush1.msra.mxu0 %v1068
          %1103 = vmatprep.subr.mxu0 0.0
          %1104 = vmatpush1.msra.mxu0 %v1069
          %1105 = vmatprep.subr.mxu0 0.0
          %1106 = vmatpush1.msra.mxu0 %v1070
          %1107 = vmatprep.subr.mxu0 0.0
          %1108 = vmatpush1.msra.mxu0 %v1071
          %1109 = vmatprep.subr.mxu0 0.0
          %1110 = vmatpush1.msra.mxu0 %v1072
          %1111 = vmatprep.subr.mxu0 0.0
          %1112 = vmatpush1.msra.mxu0 %v1073
          %1113 = vmatprep.subr.mxu0 0.0
          %1114 = vmatpush1.msra.mxu0 0.0
          %1115 = vmatprep.subr.mxu0 0.0
          %1116 = vmatpush1.msra.mxu0 0.0
          %1117 = vmatprep.subr.mxu0 0.0
          %1118 = vmatpush1.msra.mxu0 0.0
          %1119 = vmatprep.subr.mxu0 0.0
          %1120 = vmatpush1.msra.mxu0 0.0
          %1121 = vmatprep.subr.mxu0 0.0
          %1122 = vmatpush1.msra.mxu0 0.0
          %1123 = vmatprep.subr.mxu0 0.0
          %1124 = vmatpush1.msra.mxu0 0.0
          %1125 = vmatprep.subr.mxu0 0.0
          %1126 = vmatpush1.msra.mxu0 0.0
          %1127 = vmatprep.subr.mxu0 0.0
          %1128 = vmatpush1.msra.mxu0 0.0
          %1129 = vmatprep.subr.mxu0 0.0
          %1130 = vmatpush1.msra.mxu0 0.0
          %1131 = vmatprep.subr.mxu0 0.0
          %1132 = vmatpush1.msra.mxu0 0.0
          %1133 = vmatprep.subr.mxu0 0.0
          %1134 = vmatpush1.msra.mxu0 0.0
          %1135 = vmatprep.subr.mxu0 0.0
          %1136 = vmatpush1.msra.mxu0 0.0
          %1137 = vmatprep.subr.mxu0 0.0
          %1138 = vmatpush1.msra.mxu0 0.0
          %1139 = vmatprep.subr.mxu0 0.0
          %1140 = vmatpush1.msra.mxu0 0.0
          %1141 = vmatprep.subr.mxu0 0.0
          %1142 = vmatpush1.msra.mxu0 0.0
          %1143 = vmatprep.subr.mxu0 0.0
          %1144 = vmatpush1.msra.mxu0 0.0
          %1145 = vmatprep.mubr.f32.mxu0 0.0
          %1146 = vmatmul.mubr.f32.gmra.mrb[0].mxu0 %v1057
          %v1147 = vpop.f32.mrb[0].mxu0
          %v1148 = vadd.f32 %v1079, %v1147
          %v1149 = vpop.f32.mrb[0].mxu0
          %1150 = vdwg.mxu0
          %1151 = vst [vmem:[#allocation2] sm:$0xff] %v1148
        $region160: #{tpu_custom_call.1} parent=87 // pred_fallthru
          _
        %v1152 = vld [vmem:[#allocation2] sm:$0xff]
        %v1153 = vpack.c.bf16 %v1152, %v1152
        %v1154 = vld [vmem:[%s846] sm:$0xff]
        %v1155 = vld [vmem:[%s846 + $0x8] sm:$0xf]
        %v1156 = vld [vmem:[%s846 + $0xc] sm:$0xff]
        %v1157 = vld [vmem:[%s846 + $0x14] sm:$0xf]
        %v1158 = vld [vmem:[%s846 + $0x18] sm:$0xff]
        %v1159 = vld [vmem:[%s846 + $0x20] sm:$0xf]
        %v1160 = vld [vmem:[%s846 + $0x24] sm:$0xff]
        %v1161 = vld [vmem:[%s846 + $0x2c] sm:$0xf]
        %v1162 = vld [vmem:[%s846 + $0x30] sm:$0xff]
        %v1163 = vld [vmem:[%s846 + $0x38] sm:$0xf]
        %v1164 = vld [vmem:[%s846 + $0x3c] sm:$0xff]
        %v1165 = vld [vmem:[%s846 + $0x44] sm:$0xf]
        %v1166 = vld [vmem:[%s846 + $0x48] sm:$0xff]
        %v1167 = vld [vmem:[%s846 + $0x50] sm:$0xf]
        %v1168 = vld [vmem:[%s846 + $0x54] sm:$0xff]
        %v1169 = vld [vmem:[%s846 + $0x5c] sm:$0xf]
        %v1170 = vld [vmem:[%s846 + $0x60] sm:$0xff]
        %v1171 = vld [vmem:[%s846 + $0x68] sm:$0xf]
        %v1172 = vld [vmem:[%s846 + $0x6c] sm:$0xff]
        %v1173 = vld [vmem:[%s846 + $0x74] sm:$0xf]
        %v1174 = vld [vmem:[%s846 + $0x78] sm:$0xff]
        %v1175 = vld [vmem:[%s846 + $0x80] sm:$0xf]
        %v1176 = vld [vmem:[%s846 + $0x84] sm:$0xff]
        %v1177 = vld [vmem:[%s846 + $0x8c] sm:$0xf]
        %v1178 = vld [vmem:[%s846 + $0x90] sm:$0xff]
        %v1179 = vld [vmem:[%s846 + $0x98] sm:$0xf]
        %v1180 = vld [vmem:[%s846 + $0x9c] sm:$0xff]
        %v1181 = vld [vmem:[%s846 + $0xa4] sm:$0xf]
        %v1182 = vld [vmem:[%s846 + $0xa8] sm:$0xff]
        %v1183 = vld [vmem:[%s846 + $0xb0] sm:$0xf]
        %v1184 = vld [vmem:[%s846 + $0xb4] sm:$0xff]
        %v1185 = vld [vmem:[%s846 + $0xbc] sm:$0xf]
        %v1186 = vld [vmem:[%s855] sm:$0x7]
        %v1188 = vlaneseq
        %v1189 = vshrl.u32 %v1188, 7
        %v1190 = vsub.s32 0, %v1189
        %v1191 = vrot.slane %v1186, %v1190
        %v1192 = vlaneseq
        %v1193 = vshrl.u32 %v1192, 7
        %v1194 = vsub.s32 1, %v1193
        %v1195 = vrot.slane %v1186, %v1194
        %v1196 = vlaneseq
        %v1197 = vshrl.u32 %v1196, 7
        %v1198 = vsub.s32 2, %v1197
        %v1199 = vrot.slane %v1186, %v1198
        %v1235 = vunpack.c.l.b16 %v1154
        %v1236 = vunpack.c.h.b16 %v1154
        %v1237 = vunpack.c.l.b16 %v1155
        %v1238 = vunpack.c.l.b16 %v1156
        %v1239 = vunpack.c.h.b16 %v1156
        %v1240 = vunpack.c.l.b16 %v1157
        %v1241 = vunpack.c.l.b16 %v1158
        %v1242 = vunpack.c.h.b16 %v1158
        %v1243 = vunpack.c.l.b16 %v1159
        %v1244 = vunpack.c.l.b16 %v1160
        %v1245 = vunpack.c.h.b16 %v1160
        %v1246 = vunpack.c.l.b16 %v1161
        %v1247 = vunpack.c.l.b16 %v1162
        %v1248 = vunpack.c.h.b16 %v1162
        %v1249 = vunpack.c.l.b16 %v1163
        %v1250 = vunpack.c.l.b16 %v1164
        %v1251 = vunpack.c.h.b16 %v1164
        %v1252 = vunpack.c.l.b16 %v1165
        %v1253 = vunpack.c.l.b16 %v1166
        %v1254 = vunpack.c.h.b16 %v1166
        %v1255 = vunpack.c.l.b16 %v1167
        %v1256 = vunpack.c.l.b16 %v1168
        %v1257 = vunpack.c.h.b16 %v1168
        %v1258 = vunpack.c.l.b16 %v1169
        %v1259 = vunpack.c.l.b16 %v1170
        %v1260 = vunpack.c.h.b16 %v1170
        %v1261 = vunpack.c.l.b16 %v1171
        %v1262 = vunpack.c.l.b16 %v1172
        %v1263 = vunpack.c.h.b16 %v1172
        %v1264 = vunpack.c.l.b16 %v1173
        %v1265 = vunpack.c.l.b16 %v1174
        %v1266 = vunpack.c.h.b16 %v1174
        %v1267 = vunpack.c.l.b16 %v1175
        %v1268 = vunpack.c.l.b16 %v1176
        %v1269 = vunpack.c.h.b16 %v1176
        %v1270 = vunpack.c.l.b16 %v1177
        %v1271 = vunpack.c.l.b16 %v1178
        %v1272 = vunpack.c.h.b16 %v1178
        %v1273 = vunpack.c.l.b16 %v1179
        %v1274 = vunpack.c.l.b16 %v1180
        %v1275 = vunpack.c.h.b16 %v1180
        %v1276 = vunpack.c.l.b16 %v1181
        %v1277 = vunpack.c.l.b16 %v1182
        %v1278 = vunpack.c.h.b16 %v1182
        %v1279 = vunpack.c.l.b16 %v1183
        %v1280 = vunpack.c.l.b16 %v1184
        %v1281 = vunpack.c.h.b16 %v1184
        %v1282 = vunpack.c.l.b16 %v1185
        %v1283 = vpack.c.b16 %v1238, %v1235
        %v1284 = vpack.c.b16 %v1239, %v1236
        %v1285 = vpack.c.b16 %v1240, %v1237
        %v1286 = vpack.c.b16 %v1244, %v1241
        %v1287 = vpack.c.b16 %v1245, %v1242
        %v1288 = vpack.c.b16 %v1246, %v1243
        %v1289 = vpack.c.b16 %v1250, %v1247
        %v1290 = vpack.c.b16 %v1251, %v1248
        %v1291 = vpack.c.b16 %v1252, %v1249
        %v1292 = vpack.c.b16 %v1256, %v1253
        %v1293 = vpack.c.b16 %v1257, %v1254
        %v1294 = vpack.c.b16 %v1258, %v1255
        %v1295 = vpack.c.b16 %v1262, %v1259
        %v1296 = vpack.c.b16 %v1263, %v1260
        %v1297 = vpack.c.b16 %v1264, %v1261
        %v1298 = vpack.c.b16 %v1268, %v1265
        %v1299 = vpack.c.b16 %v1269, %v1266
        %v1300 = vpack.c.b16 %v1270, %v1267
        %v1301 = vpack.c.b16 %v1274, %v1271
        %v1302 = vpack.c.b16 %v1275, %v1272
        %v1303 = vpack.c.b16 %v1276, %v1273
        %v1304 = vpack.c.b16 %v1280, %v1277
        %v1305 = vpack.c.b16 %v1281, %v1278
        %v1306 = vpack.c.b16 %v1282, %v1279
        %1331 = vmatprep.subr.bf16.mxu0 %v1284
        %1332 = vmatpush1.bf16.msra.mxu0 %v1283
        %1333 = vmatprep.subr.bf16.mxu0 %v1287
        %1334 = vmatpush1.bf16.msra.mxu0 %v1286
        %1335 = vmatprep.subr.bf16.mxu0 %v1290
        %1336 = vmatpush1.bf16.msra.mxu0 %v1289
        %1337 = vmatprep.subr.bf16.mxu0 %v1293
        %1338 = vmatpush1.bf16.msra.mxu0 %v1292
        %1339 = vmatprep.subr.bf16.mxu0 %v1296
        %1340 = vmatpush1.bf16.msra.mxu0 %v1295
        %1341 = vmatprep.subr.bf16.mxu0 %v1299
        %1342 = vmatpush1.bf16.msra.mxu0 %v1298
        %1343 = vmatprep.subr.bf16.mxu0 %v1302
        %1344 = vmatpush1.bf16.msra.mxu0 %v1301
        %1345 = vmatprep.subr.bf16.mxu0 %v1305
        %1346 = vmatpush1.bf16.msra.mxu0 %v1304
        %1347 = vmatprep.subr.bf16.mxu0 0
        %1348 = vmatpush1.bf16.msra.mxu0 0
        %1349 = vmatprep.subr.bf16.mxu0 0
        %1350 = vmatpush1.bf16.msra.mxu0 0
        %1351 = vmatprep.subr.bf16.mxu0 0
        %1352 = vmatpush1.bf16.msra.mxu0 0
        %1353 = vmatprep.subr.bf16.mxu0 0
        %1354 = vmatpush1.bf16.msra.mxu0 0
        %1355 = vmatprep.subr.bf16.mxu0 0
        %1356 = vmatpush1.bf16.msra.mxu0 0
        %1357 = vmatprep.subr.bf16.mxu0 0
        %1358 = vmatpush1.bf16.msra.mxu0 0
        %1359 = vmatprep.subr.bf16.mxu0 0
        %1360 = vmatpush1.bf16.msra.mxu0 0
        %1361 = vmatprep.subr.bf16.mxu0 0
        %1362 = vmatpush1.bf16.msra.mxu0 0
        %1363 = vmatprep.mubr.bf16.mxu0 0
        %1364 = vmatmul.mubr.bf16.gmra.mrb[0].mxu0 %v1153
        %v1365 = vpop.f32.mrb[0].mxu0
        %v1366 = vadd.f32 %v1191, %v1365
        %v1367 = vpop.f32.mrb[0].mxu0
        %v1368 = vadd.f32 %v1195, %v1367
        %v1369 = vpop.f32.mrb[0].mxu0
        %v1370 = vpop.f32.mrb[0].mxu0
        %1371 = vdwg.mxu0
        %1372 = vmatprep.subr.bf16.mxu0 0
        %1373 = vmatpush1.bf16.msra.mxu0 %v1285
        %1374 = vmatprep.subr.bf16.mxu0 0
        %1375 = vmatpush1.bf16.msra.mxu0 %v1288
        %1376 = vmatprep.subr.bf16.mxu0 0
        %1377 = vmatpush1.bf16.msra.mxu0 %v1291
        %1378 = vmatprep.subr.bf16.mxu0 0
        %1379 = vmatpush1.bf16.msra.mxu0 %v1294
        %1380 = vmatprep.subr.bf16.mxu0 0
        %1381 = vmatpush1.bf16.msra.mxu0 %v1297
        %1382 = vmatprep.subr.bf16.mxu0 0
        %1383 = vmatpush1.bf16.msra.mxu0 %v1300
        %1384 = vmatprep.subr.bf16.mxu0 0
        %1385 = vmatpush1.bf16.msra.mxu0 %v1303
        %1386 = vmatprep.subr.bf16.mxu0 0
        %1387 = vmatpush1.bf16.msra.mxu0 %v1306
        %1388 = vmatprep.subr.bf16.mxu0 0
        %1389 = vmatpush1.bf16.msra.mxu0 0
        %1390 = vmatprep.subr.bf16.mxu0 0
        %1391 = vmatpush1.bf16.msra.mxu0 0
        %1392 = vmatprep.subr.bf16.mxu0 0
        %1393 = vmatpush1.bf16.msra.mxu0 0
        %1394 = vmatprep.subr.bf16.mxu0 0
        %1395 = vmatpush1.bf16.msra.mxu0 0
        %1396 = vmatprep.subr.bf16.mxu0 0
        %1397 = vmatpush1.bf16.msra.mxu0 0
        %1398 = vmatprep.subr.bf16.mxu0 0
        %1399 = vmatpush1.bf16.msra.mxu0 0
        %1400 = vmatprep.subr.bf16.mxu0 0
        %1401 = vmatpush1.bf16.msra.mxu0 0
        %1402 = vmatprep.subr.bf16.mxu0 0
        %1403 = vmatpush1.bf16.msra.mxu0 0
        %1404 = vmatprep.mubr.bf16.mxu0 0
        %1405 = vmatmul.mubr.bf16.gmra.mrb[0].mxu0 %v1153
        %v1406 = vpop.f32.mrb[0].mxu0
        %v1407 = vadd.f32 %v1199, %v1406
        %v1408 = vpop.f32.mrb[0].mxu0
        %v1409 = vpop.f32.mrb[0].mxu0
        %v1410 = vpop.f32.mrb[0].mxu0
        %1411 = vdwg.mxu0
        %v1412 = vpack.c.bf16 %v1366, %v1366
        %v1413 = vpack.c.bf16 %v1368, %v1368
        %v1414 = vpack.c.bf16 %v1407, %v1407
        %1416 = vrot.lane.b32.xlu0 %v1412, 96
        %v1417 = vpop.permute.xlu0 %1416
        %1418 = vrot.lane.b32.xlu0 %v1412, 64
        %v1419 = vpop.permute.xlu0 %1418
        %1420 = vrot.lane.b32.xlu0 %v1412, 32
        %v1421 = vpop.permute.xlu0 %1420
        %1423 = vrot.lane.b32.xlu0 %v1413, 96
        %v1424 = vpop.permute.xlu0 %1423
        %1425 = vrot.lane.b32.xlu0 %v1413, 64
        %v1426 = vpop.permute.xlu0 %1425
        %1427 = vrot.lane.b32.xlu0 %v1413, 32
        %v1428 = vpop.permute.xlu0 %1427
        %1430 = vrot.lane.b32.xlu0 %v1414, 96
        %v1431 = vpop.permute.xlu0 %1430
        %1432 = vrot.lane.b32.xlu0 %v1414, 64
        %v1433 = vpop.permute.xlu0 %1432
        %1434 = vrot.lane.b32.xlu0 %v1414, 32
        %v1435 = vpop.permute.xlu0 %1434
        %vm1436 = vcmask 261120
        %v1438 = vsel %vm1436, %v1412, 0
        %v1441 = vsel %vm1436, %v1413, 0
        %1443 = vmatprep.subr.bf16.mxu0 0
        %1444 = vmatpush1.bf16.xpose.msra.mxu0 %v1441
        %1445 = vmatprep.subr.bf16.mxu0 0
        %1446 = vmatpush1.bf16.xpose.msra.mxu0 0
        %1447 = vmatprep.subr.bf16.mxu0 0
        %1448 = vmatpush1.bf16.xpose.msra.mxu0 0
        %1449 = vmatprep.subr.bf16.mxu0 0
        %1450 = vmatpush1.bf16.xpose.msra.mxu0 0
        %1451 = vmatprep.subr.bf16.mxu0 0
        %1452 = vmatpush1.bf16.xpose.msra.mxu0 0
        %1453 = vmatprep.subr.bf16.mxu0 0
        %1454 = vmatpush1.bf16.xpose.msra.mxu0 0
        %1455 = vmatprep.subr.bf16.mxu0 0
        %1456 = vmatpush1.bf16.xpose.msra.mxu0 0
        %1457 = vmatprep.subr.bf16.mxu0 0
        %1458 = vmatpush1.bf16.xpose.msra.mxu0 0
        %1459 = vmatprep.subr.bf16.mxu0 0
        %1460 = vmatpush1.bf16.xpose.msra.mxu0 0
        %1461 = vmatprep.subr.bf16.mxu0 0
        %1462 = vmatpush1.bf16.xpose.msra.mxu0 0
        %1463 = vmatprep.subr.bf16.mxu0 0
        %1464 = vmatpush1.bf16.xpose.msra.mxu0 0
        %1465 = vmatprep.subr.bf16.mxu0 0
        %1466 = vmatpush1.bf16.xpose.msra.mxu0 0
        %1467 = vmatprep.subr.bf16.mxu0 0
        %1468 = vmatpush1.bf16.xpose.msra.mxu0 0
        %1469 = vmatprep.subr.bf16.mxu0 0
        %1470 = vmatpush1.bf16.xpose.msra.mxu0 0
        %1471 = vmatprep.subr.bf16.mxu0 0
        %1472 = vmatpush1.bf16.xpose.msra.mxu0 0
        %1473 = vmatprep.subr.bf16.mxu0 0
        %1474 = vmatpush1.bf16.xpose.msra.mxu0 0
        %1475 = vmatprep.mubr.bf16.mxu0 0
        %1476 = vmatmul.mubr.bf16.gmra.mrb[0].mxu0 %v1438
        %v1477 = vpop.f32.mrb[0].mxu0
        %v1478 = vadd.f32 0.0, %v1477
        %v1479 = vpop.f32.mrb[0].mxu0
        %v1480 = vpop.f32.mrb[0].mxu0
        %v1481 = vpop.f32.mrb[0].mxu0
        %1482 = vdwg.mxu0
        %v1484 = vsel %vm1436, %v1417, 0
        %v1487 = vsel %vm1436, %v1424, 0
        %1489 = vmatprep.subr.bf16.mxu0 0
        %1490 = vmatpush1.bf16.xpose.msra.mxu0 %v1487
        %1491 = vmatprep.subr.bf16.mxu0 0
        %1492 = vmatpush1.bf16.xpose.msra.mxu0 0
        %1493 = vmatprep.subr.bf16.mxu0 0
        %1494 = vmatpush1.bf16.xpose.msra.mxu0 0
        %1495 = vmatprep.subr.bf16.mxu0 0
        %1496 = vmatpush1.bf16.xpose.msra.mxu0 0
        %1497 = vmatprep.subr.bf16.mxu0 0
        %1498 = vmatpush1.bf16.xpose.msra.mxu0 0
        %1499 = vmatprep.subr.bf16.mxu0 0
        %1500 = vmatpush1.bf16.xpose.msra.mxu0 0
        %1501 = vmatprep.subr.bf16.mxu0 0
        %1502 = vmatpush1.bf16.xpose.msra.mxu0 0
        %1503 = vmatprep.subr.bf16.mxu0 0
        %1504 = vmatpush1.bf16.xpose.msra.mxu0 0
        %1505 = vmatprep.subr.bf16.mxu0 0
        %1506 = vmatpush1.bf16.xpose.msra.mxu0 0
        %1507 = vmatprep.subr.bf16.mxu0 0
        %1508 = vmatpush1.bf16.xpose.msra.mxu0 0
        %1509 = vmatprep.subr.bf16.mxu0 0
        %1510 = vmatpush1.bf16.xpose.msra.mxu0 0
        %1511 = vmatprep.subr.bf16.mxu0 0
        %1512 = vmatpush1.bf16.xpose.msra.mxu0 0
        %1513 = vmatprep.subr.bf16.mxu0 0
        %1514 = vmatpush1.bf16.xpose.msra.mxu0 0
        %1515 = vmatprep.subr.bf16.mxu0 0
        %1516 = vmatpush1.bf16.xpose.msra.mxu0 0
        %1517 = vmatprep.subr.bf16.mxu0 0
        %1518 = vmatpush1.bf16.xpose.msra.mxu0 0
        %1519 = vmatprep.subr.bf16.mxu0 0
        %1520 = vmatpush1.bf16.xpose.msra.mxu0 0
        %1521 = vmatprep.mubr.bf16.mxu0 0
        %1522 = vmatmul.mubr.bf16.gmra.mrb[0].mxu0 %v1484
        %v1523 = vpop.f32.mrb[0].mxu0
        %v1524 = vadd.f32 0.0, %v1523
        %v1525 = vpop.f32.mrb[0].mxu0
        %v1526 = vpop.f32.mrb[0].mxu0
        %v1527 = vpop.f32.mrb[0].mxu0
        %1528 = vdwg.mxu0
        %v1530 = vsel %vm1436, %v1419, 0
        %v1533 = vsel %vm1436, %v1426, 0
        %1535 = vmatprep.subr.bf16.mxu0 0
        %1536 = vmatpush1.bf16.xpose.msra.mxu0 %v1533
        %1537 = vmatprep.subr.bf16.mxu0 0
        %1538 = vmatpush1.bf16.xpose.msra.mxu0 0
        %1539 = vmatprep.subr.bf16.mxu0 0
        %1540 = vmatpush1.bf16.xpose.msra.mxu0 0
        %1541 = vmatprep.subr.bf16.mxu0 0
        %1542 = vmatpush1.bf16.xpose.msra.mxu0 0
        %1543 = vmatprep.subr.bf16.mxu0 0
        %1544 = vmatpush1.bf16.xpose.msra.mxu0 0
        %1545 = vmatprep.subr.bf16.mxu0 0
        %1546 = vmatpush1.bf16.xpose.msra.mxu0 0
        %1547 = vmatprep.subr.bf16.mxu0 0
        %1548 = vmatpush1.bf16.xpose.msra.mxu0 0
        %1549 = vmatprep.subr.bf16.mxu0 0
        %1550 = vmatpush1.bf16.xpose.msra.mxu0 0
        %1551 = vmatprep.subr.bf16.mxu0 0
        %1552 = vmatpush1.bf16.xpose.msra.mxu0 0
        %1553 = vmatprep.subr.bf16.mxu0 0
        %1554 = vmatpush1.bf16.xpose.msra.mxu0 0
        %1555 = vmatprep.subr.bf16.mxu0 0
        %1556 = vmatpush1.bf16.xpose.msra.mxu0 0
        %1557 = vmatprep.subr.bf16.mxu0 0
        %1558 = vmatpush1.bf16.xpose.msra.mxu0 0
        %1559 = vmatprep.subr.bf16.mxu0 0
        %1560 = vmatpush1.bf16.xpose.msra.mxu0 0
        %1561 = vmatprep.subr.bf16.mxu0 0
        %1562 = vmatpush1.bf16.xpose.msra.mxu0 0
        %1563 = vmatprep.subr.bf16.mxu0 0
        %1564 = vmatpush1.bf16.xpose.msra.mxu0 0
        %1565 = vmatprep.subr.bf16.mxu0 0
        %1566 = vmatpush1.bf16.xpose.msra.mxu0 0
        %1567 = vmatprep.mubr.bf16.mxu0 0
        %1568 = vmatmul.mubr.bf16.gmra.mrb[0].mxu0 %v1530
        %v1569 = vpop.f32.mrb[0].mxu0
        %v1570 = vadd.f32 0.0, %v1569
        %v1571 = vpop.f32.mrb[0].mxu0
        %v1572 = vpop.f32.mrb[0].mxu0
        %v1573 = vpop.f32.mrb[0].mxu0
        %1574 = vdwg.mxu0
        %v1576 = vsel %vm1436, %v1421, 0
        %v1579 = vsel %vm1436, %v1428, 0
        %1581 = vmatprep.subr.bf16.mxu0 0
        %1582 = vmatpush1.bf16.xpose.msra.mxu0 %v1579
        %1583 = vmatprep.subr.bf16.mxu0 0
        %1584 = vmatpush1.bf16.xpose.msra.mxu0 0
        %1585 = vmatprep.subr.bf16.mxu0 0
        %1586 = vmatpush1.bf16.xpose.msra.mxu0 0
        %1587 = vmatprep.subr.bf16.mxu0 0
        %1588 = vmatpush1.bf16.xpose.msra.mxu0 0
        %1589 = vmatprep.subr.bf16.mxu0 0
        %1590 = vmatpush1.bf16.xpose.msra.mxu0 0
        %1591 = vmatprep.subr.bf16.mxu0 0
        %1592 = vmatpush1.bf16.xpose.msra.mxu0 0
        %1593 = vmatprep.subr.bf16.mxu0 0
        %1594 = vmatpush1.bf16.xpose.msra.mxu0 0
        %1595 = vmatprep.subr.bf16.mxu0 0
        %1596 = vmatpush1.bf16.xpose.msra.mxu0 0
        %1597 = vmatprep.subr.bf16.mxu0 0
        %1598 = vmatpush1.bf16.xpose.msra.mxu0 0
        %1599 = vmatprep.subr.bf16.mxu0 0
        %1600 = vmatpush1.bf16.xpose.msra.mxu0 0
        %1601 = vmatprep.subr.bf16.mxu0 0
        %1602 = vmatpush1.bf16.xpose.msra.mxu0 0
        %1603 = vmatprep.subr.bf16.mxu0 0
        %1604 = vmatpush1.bf16.xpose.msra.mxu0 0
        %1605 = vmatprep.subr.bf16.mxu0 0
        %1606 = vmatpush1.bf16.xpose.msra.mxu0 0
        %1607 = vmatprep.subr.bf16.mxu0 0
        %1608 = vmatpush1.bf16.xpose.msra.mxu0 0
        %1609 = vmatprep.subr.bf16.mxu0 0
        %1610 = vmatpush1.bf16.xpose.msra.mxu0 0
        %1611 = vmatprep.subr.bf16.mxu0 0
        %1612 = vmatpush1.bf16.xpose.msra.mxu0 0
        %1613 = vmatprep.mubr.bf16.mxu0 0
        %1614 = vmatmul.mubr.bf16.gmra.mrb[0].mxu0 %v1576
        %v1615 = vpop.f32.mrb[0].mxu0
        %v1616 = vadd.f32 0.0, %v1615
        %v1617 = vpop.f32.mrb[0].mxu0
        %v1618 = vpop.f32.mrb[0].mxu0
        %v1619 = vpop.f32.mrb[0].mxu0
        %1620 = vdwg.mxu0
        %vm1621 = vcmask 64512
        %v1622 = vsel %vm1621, %v1478, -inf
        %1623 = vmax.xlane.f32.xlu0 %v1622
        %v1624 = vpop.xlane.xlu0 %1623
        %v1625 = vsel %vm1621, %v1524, -inf
        %1626 = vmax.xlane.f32.xlu0 %v1625
        %v1627 = vpop.xlane.xlu0 %1626
        %v1628 = vsel %vm1621, %v1570, -inf
        %1629 = vmax.xlane.f32.xlu0 %v1628
        %v1630 = vpop.xlane.xlu0 %1629
        %v1631 = vsel %vm1621, %v1616, -inf
        %1632 = vmax.xlane.f32.xlu0 %v1631
        %v1633 = vpop.xlane.xlu0 %1632
        %v1634 = vsub.f32 %v1478, %v1624
        %v1635 = vsub.f32 %v1524, %v1627
        %v1636 = vsub.f32 %v1570, %v1630
        %v1637 = vsub.f32 %v1616, %v1633
        %v1638 = vmul.f32 %v1634, 1.442695
        %v1639 = vpow.pop %v1638
        %v1640 = vmul.f32 %v1635, 1.442695
        %v1641 = vpow.pop %v1640
        %v1642 = vmul.f32 %v1636, 1.442695
        %v1643 = vpow.pop %v1642
        %v1644 = vmul.f32 %v1637, 1.442695
        %v1645 = vpow.pop %v1644
        %v1646 = vsel %vm1621, %v1639, 0.0
        %1647 = vadd.xlane.f32.xlu0 %v1646
        %v1648 = vpop.xlane.xlu0 %1647
        %v1649 = vsel %vm1621, %v1641, 0.0
        %1650 = vadd.xlane.f32.xlu0 %v1649
        %v1651 = vpop.xlane.xlu0 %1650
        %v1652 = vsel %vm1621, %v1643, 0.0
        %1653 = vadd.xlane.f32.xlu0 %v1652
        %v1654 = vpop.xlane.xlu0 %1653
        %v1655 = vsel %vm1621, %v1645, 0.0
        %1656 = vadd.xlane.f32.xlu0 %v1655
        %v1657 = vpop.xlane.xlu0 %1656
        %v1658 = vpack.c.bf16 %v1639, %v1639
        %v1659 = vpack.c.bf16 %v1641, %v1641
        %v1660 = vpack.c.bf16 %v1643, %v1643
        %v1661 = vpack.c.bf16 %v1645, %v1645
        %v1663 = vsel %vm1621, %v1658, 0
        %vm1665 = vcmask 1043456
        %v1667 = vsel %vm1665, %v1414, 0
        %1669 = vmatprep.subr.bf16.mxu0 0
        %1670 = vmatpush1.bf16.msra.mxu0 %v1667
        %1671 = vmatprep.subr.bf16.mxu0 0
        %1672 = vmatpush1.bf16.msra.mxu0 0
        %1673 = vmatprep.subr.bf16.mxu0 0
        %1674 = vmatpush1.bf16.msra.mxu0 0
        %1675 = vmatprep.subr.bf16.mxu0 0
        %1676 = vmatpush1.bf16.msra.mxu0 0
        %1677 = vmatprep.subr.bf16.mxu0 0
        %1678 = vmatpush1.bf16.msra.mxu0 0
        %1679 = vmatprep.subr.bf16.mxu0 0
        %1680 = vmatpush1.bf16.msra.mxu0 0
        %1681 = vmatprep.subr.bf16.mxu0 0
        %1682 = vmatpush1.bf16.msra.mxu0 0
        %1683 = vmatprep.subr.bf16.mxu0 0
        %1684 = vmatpush1.bf16.msra.mxu0 0
        %1685 = vmatprep.subr.bf16.mxu0 0
        %1686 = vmatpush1.bf16.msra.mxu0 0
        %1687 = vmatprep.subr.bf16.mxu0 0
        %1688 = vmatpush1.bf16.msra.mxu0 0
        %1689 = vmatprep.subr.bf16.mxu0 0
        %1690 = vmatpush1.bf16.msra.mxu0 0
        %1691 = vmatprep.subr.bf16.mxu0 0
        %1692 = vmatpush1.bf16.msra.mxu0 0
        %1693 = vmatprep.subr.bf16.mxu0 0
        %1694 = vmatpush1.bf16.msra.mxu0 0
        %1695 = vmatprep.subr.bf16.mxu0 0
        %1696 = vmatpush1.bf16.msra.mxu0 0
        %1697 = vmatprep.subr.bf16.mxu0 0
        %1698 = vmatpush1.bf16.msra.mxu0 0
        %1699 = vmatprep.subr.bf16.mxu0 0
        %1700 = vmatpush1.bf16.msra.mxu0 0
        %1701 = vmatprep.mubr.bf16.mxu0 0
        %1702 = vmatmul.mubr.bf16.gmra.mrb[0].mxu0 %v1663
        %v1703 = vpop.f32.mrb[0].mxu0
        %v1704 = vadd.f32 0.0, %v1703
        %v1705 = vpop.f32.mrb[0].mxu0
        %v1706 = vpop.f32.mrb[0].mxu0
        %v1707 = vpop.f32.mrb[0].mxu0
        %1708 = vdwg.mxu0
        %v1710 = vsel %vm1621, %v1659, 0
        %v1713 = vsel %vm1665, %v1431, 0
        %1715 = vmatprep.subr.bf16.mxu0 0
        %1716 = vmatpush1.bf16.msra.mxu0 %v1713
        %1717 = vmatprep.subr.bf16.mxu0 0
        %1718 = vmatpush1.bf16.msra.mxu0 0
        %1719 = vmatprep.subr.bf16.mxu0 0
        %1720 = vmatpush1.bf16.msra.mxu0 0
        %1721 = vmatprep.subr.bf16.mxu0 0
        %1722 = vmatpush1.bf16.msra.mxu0 0
        %1723 = vmatprep.subr.bf16.mxu0 0
        %1724 = vmatpush1.bf16.msra.mxu0 0
        %1725 = vmatprep.subr.bf16.mxu0 0
        %1726 = vmatpush1.bf16.msra.mxu0 0
        %1727 = vmatprep.subr.bf16.mxu0 0
        %1728 = vmatpush1.bf16.msra.mxu0 0
        %1729 = vmatprep.subr.bf16.mxu0 0
        %1730 = vmatpush1.bf16.msra.mxu0 0
        %1731 = vmatprep.subr.bf16.mxu0 0
        %1732 = vmatpush1.bf16.msra.mxu0 0
        %1733 = vmatprep.subr.bf16.mxu0 0
        %1734 = vmatpush1.bf16.msra.mxu0 0
        %1735 = vmatprep.subr.bf16.mxu0 0
        %1736 = vmatpush1.bf16.msra.mxu0 0
        %1737 = vmatprep.subr.bf16.mxu0 0
        %1738 = vmatpush1.bf16.msra.mxu0 0
        %1739 = vmatprep.subr.bf16.mxu0 0
        %1740 = vmatpush1.bf16.msra.mxu0 0
        %1741 = vmatprep.subr.bf16.mxu0 0
        %1742 = vmatpush1.bf16.msra.mxu0 0
        %1743 = vmatprep.subr.bf16.mxu0 0
        %1744 = vmatpush1.bf16.msra.mxu0 0
        %1745 = vmatprep.subr.bf16.mxu0 0
        %1746 = vmatpush1.bf16.msra.mxu0 0
        %1747 = vmatprep.mubr.bf16.mxu0 0
        %1748 = vmatmul.mubr.bf16.gmra.mrb[0].mxu0 %v1710
        %v1749 = vpop.f32.mrb[0].mxu0
        %v1750 = vadd.f32 0.0, %v1749
        %v1751 = vpop.f32.mrb[0].mxu0
        %v1752 = vpop.f32.mrb[0].mxu0
        %v1753 = vpop.f32.mrb[0].mxu0
        %1754 = vdwg.mxu0
        %v1756 = vsel %vm1621, %v1660, 0
        %v1759 = vsel %vm1665, %v1433, 0
        %1761 = vmatprep.subr.bf16.mxu0 0
        %1762 = vmatpush1.bf16.msra.mxu0 %v1759
        %1763 = vmatprep.subr.bf16.mxu0 0
        %1764 = vmatpush1.bf16.msra.mxu0 0
        %1765 = vmatprep.subr.bf16.mxu0 0
        %1766 = vmatpush1.bf16.msra.mxu0 0
        %1767 = vmatprep.subr.bf16.mxu0 0
        %1768 = vmatpush1.bf16.msra.mxu0 0
        %1769 = vmatprep.subr.bf16.mxu0 0
        %1770 = vmatpush1.bf16.msra.mxu0 0
        %1771 = vmatprep.subr.bf16.mxu0 0
        %1772 = vmatpush1.bf16.msra.mxu0 0
        %1773 = vmatprep.subr.bf16.mxu0 0
        %1774 = vmatpush1.bf16.msra.mxu0 0
        %1775 = vmatprep.subr.bf16.mxu0 0
        %1776 = vmatpush1.bf16.msra.mxu0 0
        %1777 = vmatprep.subr.bf16.mxu0 0
        %1778 = vmatpush1.bf16.msra.mxu0 0
        %1779 = vmatprep.subr.bf16.mxu0 0
        %1780 = vmatpush1.bf16.msra.mxu0 0
        %1781 = vmatprep.subr.bf16.mxu0 0
        %1782 = vmatpush1.bf16.msra.mxu0 0
        %1783 = vmatprep.subr.bf16.mxu0 0
        %1784 = vmatpush1.bf16.msra.mxu0 0
        %1785 = vmatprep.subr.bf16.mxu0 0
        %1786 = vmatpush1.bf16.msra.mxu0 0
        %1787 = vmatprep.subr.bf16.mxu0 0
        %1788 = vmatpush1.bf16.msra.mxu0 0
        %1789 = vmatprep.subr.bf16.mxu0 0
        %1790 = vmatpush1.bf16.msra.mxu0 0
        %1791 = vmatprep.subr.bf16.mxu0 0
        %1792 = vmatpush1.bf16.msra.mxu0 0
        %1793 = vmatprep.mubr.bf16.mxu0 0
        %1794 = vmatmul.mubr.bf16.gmra.mrb[0].mxu0 %v1756
        %v1795 = vpop.f32.mrb[0].mxu0
        %v1796 = vadd.f32 0.0, %v1795
        %v1797 = vpop.f32.mrb[0].mxu0
        %v1798 = vpop.f32.mrb[0].mxu0
        %v1799 = vpop.f32.mrb[0].mxu0
        %1800 = vdwg.mxu0
        %v1802 = vsel %vm1621, %v1661, 0
        %v1805 = vsel %vm1665, %v1435, 0
        %1807 = vmatprep.subr.bf16.mxu0 0
        %1808 = vmatpush1.bf16.msra.mxu0 %v1805
        %1809 = vmatprep.subr.bf16.mxu0 0
        %1810 = vmatpush1.bf16.msra.mxu0 0
        %1811 = vmatprep.subr.bf16.mxu0 0
        %1812 = vmatpush1.bf16.msra.mxu0 0
        %1813 = vmatprep.subr.bf16.mxu0 0
        %1814 = vmatpush1.bf16.msra.mxu0 0
        %1815 = vmatprep.subr.bf16.mxu0 0
        %1816 = vmatpush1.bf16.msra.mxu0 0
        %1817 = vmatprep.subr.bf16.mxu0 0
        %1818 = vmatpush1.bf16.msra.mxu0 0
        %1819 = vmatprep.subr.bf16.mxu0 0
        %1820 = vmatpush1.bf16.msra.mxu0 0
        %1821 = vmatprep.subr.bf16.mxu0 0
        %1822 = vmatpush1.bf16.msra.mxu0 0
        %1823 = vmatprep.subr.bf16.mxu0 0
        %1824 = vmatpush1.bf16.msra.mxu0 0
        %1825 = vmatprep.subr.bf16.mxu0 0
        %1826 = vmatpush1.bf16.msra.mxu0 0
        %1827 = vmatprep.subr.bf16.mxu0 0
        %1828 = vmatpush1.bf16.msra.mxu0 0
        %1829 = vmatprep.subr.bf16.mxu0 0
        %1830 = vmatpush1.bf16.msra.mxu0 0
        %1831 = vmatprep.subr.bf16.mxu0 0
        %1832 = vmatpush1.bf16.msra.mxu0 0
        %1833 = vmatprep.subr.bf16.mxu0 0
        %1834 = vmatpush1.bf16.msra.mxu0 0
        %1835 = vmatprep.subr.bf16.mxu0 0
        %1836 = vmatpush1.bf16.msra.mxu0 0
        %1837 = vmatprep.subr.bf16.mxu0 0
        %1838 = vmatpush1.bf16.msra.mxu0 0
        %1839 = vmatprep.mubr.bf16.mxu0 0
        %1840 = vmatmul.mubr.bf16.gmra.mrb[0].mxu0 %v1802
        %v1841 = vpop.f32.mrb[0].mxu0
        %v1842 = vadd.f32 0.0, %v1841
        %v1843 = vpop.f32.mrb[0].mxu0
        %v1844 = vpop.f32.mrb[0].mxu0
        %v1845 = vpop.f32.mrb[0].mxu0
        %1846 = vdwg.mxu0
        %v1847 = vrcp.pop %v1648
        %v1848 = vrcp.pop %v1651
        %v1849 = vrcp.pop %v1654
        %v1850 = vrcp.pop %v1657
        %v1851 = vmul.f32 %v1704, %v1847
        %v1852 = vmul.f32 %v1750, %v1848
        %v1853 = vmul.f32 %v1796, %v1849
        %v1854 = vmul.f32 %v1842, %v1850
        %1855 = vst.msk [vmem:[#allocation3] sm:$0xff] %vm1436, %v1851
        %1857 = vrot.lane.b32.xlu0 %v1852, 32
        %v1858 = vpop.permute.xlu0 %1857
        %vm1860 = vcmask 523520
        %1861 = vst.msk [vmem:[#allocation3] sm:$0xff] %vm1860, %v1858
        %1863 = vrot.lane.b32.xlu0 %v1853, 64
        %v1864 = vpop.permute.xlu0 %1863
        %vm1866 = vcmask 785920
        %1867 = vst.msk [vmem:[#allocation3] sm:$0xff] %vm1866, %v1864
        %1869 = vrot.lane.b32.xlu0 %v1854, 96
        %v1870 = vpop.permute.xlu0 %1869
        %vm1872 = vcmask 1048320
        %1873 = vst.msk [vmem:[#allocation3] sm:$0xff] %vm1872, %v1870
        %v1874 = vld [vmem:[#allocation3] sm:$0xff]
        %v1875 = vpack.c.bf16 %v1874, %v1874
        %v1876 = vld [vmem:[%s864] sm:$0xf]
        %v1877 = vld [vmem:[%s864 + $0x4] sm:$0xf]
        %v1878 = vld [vmem:[%s864 + $0x8] sm:$0xf]
        %v1879 = vld [vmem:[%s864 + $0xc] sm:$0xf]
        %v1880 = vld [vmem:[%s864 + $0x10] sm:$0xf]
        %v1881 = vld [vmem:[%s864 + $0x14] sm:$0xf]
        %v1882 = vld [vmem:[%s864 + $0x18] sm:$0xf]
        %v1883 = vld [vmem:[%s864 + $0x1c] sm:$0xf]
        %v1884 = vld [vmem:[%s864 + $0x20] sm:$0xf]
        %v1885 = vld [vmem:[%s864 + $0x24] sm:$0xf]
        %v1886 = vld [vmem:[%s864 + $0x28] sm:$0xf]
        %v1887 = vld [vmem:[%s864 + $0x2c] sm:$0xf]
        %v1888 = vld [vmem:[%s864 + $0x30] sm:$0xf]
        %v1889 = vld [vmem:[%s864 + $0x34] sm:$0xf]
        %v1890 = vld [vmem:[%s864 + $0x38] sm:$0xf]
        %v1891 = vld [vmem:[%s864 + $0x3c] sm:$0xf]
        %v1892 = vld [vmem:[%s872] sm:$0x1]
        %v1894 = vlaneseq
        %v1895 = vshrl.u32 %v1894, 7
        %v1896 = vsub.s32 0, %v1895
        %v1897 = vrot.slane %v1892, %v1896
        %v1915 = vunpack.c.l.b16 %v1876
        %v1916 = vunpack.c.l.b16 %v1877
        %v1917 = vunpack.c.l.b16 %v1878
        %v1918 = vunpack.c.l.b16 %v1879
        %v1919 = vunpack.c.l.b16 %v1880
        %v1920 = vunpack.c.l.b16 %v1881
        %v1921 = vunpack.c.l.b16 %v1882
        %v1922 = vunpack.c.l.b16 %v1883
        %v1923 = vunpack.c.l.b16 %v1884
        %v1924 = vunpack.c.l.b16 %v1885
        %v1925 = vunpack.c.l.b16 %v1886
        %v1926 = vunpack.c.l.b16 %v1887
        %v1927 = vunpack.c.l.b16 %v1888
        %v1928 = vunpack.c.l.b16 %v1889
        %v1929 = vunpack.c.l.b16 %v1890
        %v1930 = vunpack.c.l.b16 %v1891
        %v1931 = vpack.c.b16 %v1916, %v1915
        %v1932 = vpack.c.b16 %v1918, %v1917
        %v1933 = vpack.c.b16 %v1920, %v1919
        %v1934 = vpack.c.b16 %v1922, %v1921
        %v1935 = vpack.c.b16 %v1924, %v1923
        %v1936 = vpack.c.b16 %v1926, %v1925
        %v1937 = vpack.c.b16 %v1928, %v1927
        %v1938 = vpack.c.b16 %v1930, %v1929
        %1947 = vmatprep.subr.bf16.mxu0 0
        %1948 = vmatpush1.bf16.msra.mxu0 %v1931
        %1949 = vmatprep.subr.bf16.mxu0 0
        %1950 = vmatpush1.bf16.msra.mxu0 %v1932
        %1951 = vmatprep.subr.bf16.mxu0 0
        %1952 = vmatpush1.bf16.msra.mxu0 %v1933
        %1953 = vmatprep.subr.bf16.mxu0 0
        %1954 = vmatpush1.bf16.msra.mxu0 %v1934
        %1955 = vmatprep.subr.bf16.mxu0 0
        %1956 = vmatpush1.bf16.msra.mxu0 %v1935
        %1957 = vmatprep.subr.bf16.mxu0 0
        %1958 = vmatpush1.bf16.msra.mxu0 %v1936
        %1959 = vmatprep.subr.bf16.mxu0 0
        %1960 = vmatpush1.bf16.msra.mxu0 %v1937
        %1961 = vmatprep.subr.bf16.mxu0 0
        %1962 = vmatpush1.bf16.msra.mxu0 %v1938
        %1963 = vmatprep.subr.bf16.mxu0 0
        %1964 = vmatpush1.bf16.msra.mxu0 0
        %1965 = vmatprep.subr.bf16.mxu0 0
        %1966 = vmatpush1.bf16.msra.mxu0 0
        %1967 = vmatprep.subr.bf16.mxu0 0
        %1968 = vmatpush1.bf16.msra.mxu0 0
        %1969 = vmatprep.subr.bf16.mxu0 0
        %1970 = vmatpush1.bf16.msra.mxu0 0
        %1971 = vmatprep.subr.bf16.mxu0 0
        %1972 = vmatpush1.bf16.msra.mxu0 0
        %1973 = vmatprep.subr.bf16.mxu0 0
        %1974 = vmatpush1.bf16.msra.mxu0 0
        %1975 = vmatprep.subr.bf16.mxu0 0
        %1976 = vmatpush1.bf16.msra.mxu0 0
        %1977 = vmatprep.subr.bf16.mxu0 0
        %1978 = vmatpush1.bf16.msra.mxu0 0
        %1979 = vmatprep.mubr.bf16.mxu0 0
        %1980 = vmatmul.mubr.bf16.gmra.mrb[0].mxu0 %v1875
        %v1981 = vpop.f32.mrb[0].mxu0
        %v1982 = vadd.f32 %v1897, %v1981
        %v1983 = vpop.f32.mrb[0].mxu0
        %v1984 = vpop.f32.mrb[0].mxu0
        %v1985 = vpop.f32.mrb[0].mxu0
        %1986 = vdwg.mxu0
        %v1987 = vadd.f32 %v1152, %v1982
        %v1988 = vld [vmem:[%s880] sm:$0x1]
        %v1989 = vld [vmem:[%s888] sm:$0x1]
        %1990 = vadd.xlane.f32.xlu0 %v1987
        %v1991 = vpop.xlane.xlu0 %1990
        %v1992 = vrcp.pop 128.0
        %v1993 = vmul.f32 %v1991, %v1992
        %v1994 = vsub.f32 %v1987, %v1993
        %v1995 = vmul.f32 %v1994, %v1994
        %1996 = vadd.xlane.f32.xlu0 %v1995
        %v1997 = vpop.xlane.xlu0 %1996
        %v1998 = vmul.f32 %v1997, %v1992
        %v1999 = vadd.f32 %v1998, 1e-05
        %v2000 = vrsqrt.pop %v1999
        %v2001 = vmul.f32 %v1994, %v2000
        %v2003 = vlaneseq
        %v2004 = vshrl.u32 %v2003, 7
        %v2005 = vsub.s32 0, %v2004
        %v2006 = vrot.slane %v1988, %v2005
        %v2008 = vmul.f32 %v2001, %v2006
        %v2010 = vlaneseq
        %v2011 = vshrl.u32 %v2010, 7
        %v2012 = vsub.s32 0, %v2011
        %v2013 = vrot.slane %v1989, %v2012
        %v2015 = vadd.f32 %v2008, %v2013
        %v2016 = vpack.c.bf16 %v2015, %v2015
        %v2017 = vld [vmem:[%s897] sm:$0xff]
        %v2018 = vld [vmem:[%s897 + $0x8] sm:$0xff]
        %v2019 = vld [vmem:[%s897 + $0x10] sm:$0xff]
        %v2020 = vld [vmem:[%s897 + $0x18] sm:$0xff]
        %v2021 = vld [vmem:[%s897 + $0x20] sm:$0xff]
        %v2022 = vld [vmem:[%s897 + $0x28] sm:$0xff]
        %v2023 = vld [vmem:[%s897 + $0x30] sm:$0xff]
        %v2024 = vld [vmem:[%s897 + $0x38] sm:$0xff]
        %v2025 = vld [vmem:[%s897 + $0x40] sm:$0xff]
        %v2026 = vld [vmem:[%s897 + $0x48] sm:$0xff]
        %v2027 = vld [vmem:[%s897 + $0x50] sm:$0xff]
        %v2028 = vld [vmem:[%s897 + $0x58] sm:$0xff]
        %v2029 = vld [vmem:[%s897 + $0x60] sm:$0xff]
        %v2030 = vld [vmem:[%s897 + $0x68] sm:$0xff]
        %v2031 = vld [vmem:[%s897 + $0x70] sm:$0xff]
        %v2032 = vld [vmem:[%s897 + $0x78] sm:$0xff]
        %v2033 = vld [vmem:[%s906] sm:$0x3]
        %v2035 = vlaneseq
        %v2036 = vshrl.u32 %v2035, 7
        %v2037 = vsub.s32 0, %v2036
        %v2038 = vrot.slane %v2033, %v2037
        %v2039 = vlaneseq
        %v2040 = vshrl.u32 %v2039, 7
        %v2041 = vsub.s32 1, %v2040
        %v2042 = vrot.slane %v2033, %v2041
        %v2061 = vunpack.c.l.b16 %v2017
        %v2062 = vunpack.c.h.b16 %v2017
        %v2063 = vunpack.c.l.b16 %v2018
        %v2064 = vunpack.c.h.b16 %v2018
        %v2065 = vunpack.c.l.b16 %v2019
        %v2066 = vunpack.c.h.b16 %v2019
        %v2067 = vunpack.c.l.b16 %v2020
        %v2068 = vunpack.c.h.b16 %v2020
        %v2069 = vunpack.c.l.b16 %v2021
        %v2070 = vunpack.c.h.b16 %v2021
        %v2071 = vunpack.c.l.b16 %v2022
        %v2072 = vunpack.c.h.b16 %v2022
        %v2073 = vunpack.c.l.b16 %v2023
        %v2074 = vunpack.c.h.b16 %v2023
        %v2075 = vunpack.c.l.b16 %v2024
        %v2076 = vunpack.c.h.b16 %v2024
        %v2077 = vunpack.c.l.b16 %v2025
        %v2078 = vunpack.c.h.b16 %v2025
        %v2079 = vunpack.c.l.b16 %v2026
        %v2080 = vunpack.c.h.b16 %v2026
        %v2081 = vunpack.c.l.b16 %v2027
        %v2082 = vunpack.c.h.b16 %v2027
        %v2083 = vunpack.c.l.b16 %v2028
        %v2084 = vunpack.c.h.b16 %v2028
        %v2085 = vunpack.c.l.b16 %v2029
        %v2086 = vunpack.c.h.b16 %v2029
        %v2087 = vunpack.c.l.b16 %v2030
        %v2088 = vunpack.c.h.b16 %v2030
        %v2089 = vunpack.c.l.b16 %v2031
        %v2090 = vunpack.c.h.b16 %v2031
        %v2091 = vunpack.c.l.b16 %v2032
        %v2092 = vunpack.c.h.b16 %v2032
        %v2093 = vpack.c.b16 %v2063, %v2061
        %v2094 = vpack.c.b16 %v2064, %v2062
        %v2095 = vpack.c.b16 %v2067, %v2065
        %v2096 = vpack.c.b16 %v2068, %v2066
        %v2097 = vpack.c.b16 %v2071, %v2069
        %v2098 = vpack.c.b16 %v2072, %v2070
        %v2099 = vpack.c.b16 %v2075, %v2073
        %v2100 = vpack.c.b16 %v2076, %v2074
        %v2101 = vpack.c.b16 %v2079, %v2077
        %v2102 = vpack.c.b16 %v2080, %v2078
        %v2103 = vpack.c.b16 %v2083, %v2081
        %v2104 = vpack.c.b16 %v2084, %v2082
        %v2105 = vpack.c.b16 %v2087, %v2085
        %v2106 = vpack.c.b16 %v2088, %v2086
        %v2107 = vpack.c.b16 %v2091, %v2089
        %v2108 = vpack.c.b16 %v2092, %v2090
        %2125 = vmatprep.subr.bf16.mxu0 %v2094
        %2126 = vmatpush1.bf16.msra.mxu0 %v2093
        %2127 = vmatprep.subr.bf16.mxu0 %v2096
        %2128 = vmatpush1.bf16.msra.mxu0 %v2095
        %2129 = vmatprep.subr.bf16.mxu0 %v2098
        %2130 = vmatpush1.bf16.msra.mxu0 %v2097
        %2131 = vmatprep.subr.bf16.mxu0 %v2100
        %2132 = vmatpush1.bf16.msra.mxu0 %v2099
        %2133 = vmatprep.subr.bf16.mxu0 %v2102
        %2134 = vmatpush1.bf16.msra.mxu0 %v2101
        %2135 = vmatprep.subr.bf16.mxu0 %v2104
        %2136 = vmatpush1.bf16.msra.mxu0 %v2103
        %2137 = vmatprep.subr.bf16.mxu0 %v2106
        %2138 = vmatpush1.bf16.msra.mxu0 %v2105
        %2139 = vmatprep.subr.bf16.mxu0 %v2108
        %2140 = vmatpush1.bf16.msra.mxu0 %v2107
        %2141 = vmatprep.subr.bf16.mxu0 0
        %2142 = vmatpush1.bf16.msra.mxu0 0
        %2143 = vmatprep.subr.bf16.mxu0 0
        %2144 = vmatpush1.bf16.msra.mxu0 0
        %2145 = vmatprep.subr.bf16.mxu0 0
        %2146 = vmatpush1.bf16.msra.mxu0 0
        %2147 = vmatprep.subr.bf16.mxu0 0
        %2148 = vmatpush1.bf16.msra.mxu0 0
        %2149 = vmatprep.subr.bf16.mxu0 0
        %2150 = vmatpush1.bf16.msra.mxu0 0
        %2151 = vmatprep.subr.bf16.mxu0 0
        %2152 = vmatpush1.bf16.msra.mxu0 0
        %2153 = vmatprep.subr.bf16.mxu0 0
        %2154 = vmatpush1.bf16.msra.mxu0 0
        %2155 = vmatprep.subr.bf16.mxu0 0
        %2156 = vmatpush1.bf16.msra.mxu0 0
        %2157 = vmatprep.mubr.bf16.mxu0 0
        %2158 = vmatmul.mubr.bf16.gmra.mrb[0].mxu0 %v2016
        %v2159 = vpop.f32.mrb[0].mxu0
        %v2160 = vadd.f32 %v2038, %v2159
        %v2161 = vpop.f32.mrb[0].mxu0
        %v2162 = vadd.f32 %v2042, %v2161
        %v2163 = vpop.f32.mrb[0].mxu0
        %v2164 = vpop.f32.mrb[0].mxu0
        %2165 = vdwg.mxu0
        %v2166 = vmax.f32 %v2160, 0.0
        %v2167 = vmax.f32 %v2162, 0.0
        %v2168 = vpack.c.bf16 %v2166, %v2166
        %v2169 = vpack.c.bf16 %v2167, %v2167
        %v2170 = vld [vmem:[%s915] sm:$0xf]
        %v2171 = vld [vmem:[%s915 + $0x4] sm:$0xf]
        %v2172 = vld [vmem:[%s915 + $0x8] sm:$0xf]
        %v2173 = vld [vmem:[%s915 + $0xc] sm:$0xf]
        %v2174 = vld [vmem:[%s915 + $0x10] sm:$0xf]
        %v2175 = vld [vmem:[%s915 + $0x14] sm:$0xf]
        %v2176 = vld [vmem:[%s915 + $0x18] sm:$0xf]
        %v2177 = vld [vmem:[%s915 + $0x1c] sm:$0xf]
        %v2178 = vld [vmem:[%s915 + $0x20] sm:$0xf]
        %v2179 = vld [vmem:[%s915 + $0x24] sm:$0xf]
        %v2180 = vld [vmem:[%s915 + $0x28] sm:$0xf]
        %v2181 = vld [vmem:[%s915 + $0x2c] sm:$0xf]
        %v2182 = vld [vmem:[%s915 + $0x30] sm:$0xf]
        %v2183 = vld [vmem:[%s915 + $0x34] sm:$0xf]
        %v2184 = vld [vmem:[%s915 + $0x38] sm:$0xf]
        %v2185 = vld [vmem:[%s915 + $0x3c] sm:$0xf]
        %v2186 = vld [vmem:[%s915 + $0x40] sm:$0xf]
        %v2187 = vld [vmem:[%s915 + $0x44] sm:$0xf]
        %v2188 = vld [vmem:[%s915 + $0x48] sm:$0xf]
        %v2189 = vld [vmem:[%s915 + $0x4c] sm:$0xf]
        %v2190 = vld [vmem:[%s915 + $0x50] sm:$0xf]
        %v2191 = vld [vmem:[%s915 + $0x54] sm:$0xf]
        %v2192 = vld [vmem:[%s915 + $0x58] sm:$0xf]
        %v2193 = vld [vmem:[%s915 + $0x5c] sm:$0xf]
        %v2194 = vld [vmem:[%s915 + $0x60] sm:$0xf]
        %v2195 = vld [vmem:[%s915 + $0x64] sm:$0xf]
        %v2196 = vld [vmem:[%s915 + $0x68] sm:$0xf]
        %v2197 = vld [vmem:[%s915 + $0x6c] sm:$0xf]
        %v2198 = vld [vmem:[%s915 + $0x70] sm:$0xf]
        %v2199 = vld [vmem:[%s915 + $0x74] sm:$0xf]
        %v2200 = vld [vmem:[%s915 + $0x78] sm:$0xf]
        %v2201 = vld [vmem:[%s915 + $0x7c] sm:$0xf]
        %v2202 = vld [vmem:[%s923] sm:$0x1]
        %v2204 = vlaneseq
        %v2205 = vshrl.u32 %v2204, 7
        %v2206 = vsub.s32 0, %v2205
        %v2207 = vrot.slane %v2202, %v2206
        %v2241 = vunpack.c.l.b16 %v2170
        %v2242 = vunpack.c.l.b16 %v2171
        %v2243 = vunpack.c.l.b16 %v2172
        %v2244 = vunpack.c.l.b16 %v2173
        %v2245 = vunpack.c.l.b16 %v2174
        %v2246 = vunpack.c.l.b16 %v2175
        %v2247 = vunpack.c.l.b16 %v2176
        %v2248 = vunpack.c.l.b16 %v2177
        %v2249 = vunpack.c.l.b16 %v2178
        %v2250 = vunpack.c.l.b16 %v2179
        %v2251 = vunpack.c.l.b16 %v2180
        %v2252 = vunpack.c.l.b16 %v2181
        %v2253 = vunpack.c.l.b16 %v2182
        %v2254 = vunpack.c.l.b16 %v2183
        %v2255 = vunpack.c.l.b16 %v2184
        %v2256 = vunpack.c.l.b16 %v2185
        %v2257 = vunpack.c.l.b16 %v2186
        %v2258 = vunpack.c.l.b16 %v2187
        %v2259 = vunpack.c.l.b16 %v2188
        %v2260 = vunpack.c.l.b16 %v2189
        %v2261 = vunpack.c.l.b16 %v2190
        %v2262 = vunpack.c.l.b16 %v2191
        %v2263 = vunpack.c.l.b16 %v2192
        %v2264 = vunpack.c.l.b16 %v2193
        %v2265 = vunpack.c.l.b16 %v2194
        %v2266 = vunpack.c.l.b16 %v2195
        %v2267 = vunpack.c.l.b16 %v2196
        %v2268 = vunpack.c.l.b16 %v2197
        %v2269 = vunpack.c.l.b16 %v2198
        %v2270 = vunpack.c.l.b16 %v2199
        %v2271 = vunpack.c.l.b16 %v2200
        %v2272 = vunpack.c.l.b16 %v2201
        %v2273 = vpack.c.b16 %v2242, %v2241
        %v2274 = vpack.c.b16 %v2244, %v2243
        %v2275 = vpack.c.b16 %v2246, %v2245
        %v2276 = vpack.c.b16 %v2248, %v2247
        %v2277 = vpack.c.b16 %v2250, %v2249
        %v2278 = vpack.c.b16 %v2252, %v2251
        %v2279 = vpack.c.b16 %v2254, %v2253
        %v2280 = vpack.c.b16 %v2256, %v2255
        %v2281 = vpack.c.b16 %v2258, %v2257
        %v2282 = vpack.c.b16 %v2260, %v2259
        %v2283 = vpack.c.b16 %v2262, %v2261
        %v2284 = vpack.c.b16 %v2264, %v2263
        %v2285 = vpack.c.b16 %v2266, %v2265
        %v2286 = vpack.c.b16 %v2268, %v2267
        %v2287 = vpack.c.b16 %v2270, %v2269
        %v2288 = vpack.c.b16 %v2272, %v2271
        %2305 = vmatprep.subr.bf16.mxu0 0
        %2306 = vmatpush1.bf16.msra.mxu0 %v2273
        %2307 = vmatprep.subr.bf16.mxu0 0
        %2308 = vmatpush1.bf16.msra.mxu0 %v2274
        %2309 = vmatprep.subr.bf16.mxu0 0
        %2310 = vmatpush1.bf16.msra.mxu0 %v2275
        %2311 = vmatprep.subr.bf16.mxu0 0
        %2312 = vmatpush1.bf16.msra.mxu0 %v2276
        %2313 = vmatprep.subr.bf16.mxu0 0
        %2314 = vmatpush1.bf16.msra.mxu0 %v2277
        %2315 = vmatprep.subr.bf16.mxu0 0
        %2316 = vmatpush1.bf16.msra.mxu0 %v2278
        %2317 = vmatprep.subr.bf16.mxu0 0
        %2318 = vmatpush1.bf16.msra.mxu0 %v2279
        %2319 = vmatprep.subr.bf16.mxu0 0
        %2320 = vmatpush1.bf16.msra.mxu0 %v2280
        %2321 = vmatprep.subr.bf16.mxu0 0
        %2322 = vmatpush1.bf16.msra.mxu0 %v2281
        %2323 = vmatprep.subr.bf16.mxu0 0
        %2324 = vmatpush1.bf16.msra.mxu0 %v2282
        %2325 = vmatprep.subr.bf16.mxu0 0
        %2326 = vmatpush1.bf16.msra.mxu0 %v2283
        %2327 = vmatprep.subr.bf16.mxu0 0
        %2328 = vmatpush1.bf16.msra.mxu0 %v2284
        %2329 = vmatprep.subr.bf16.mxu0 0
        %2330 = vmatpush1.bf16.msra.mxu0 %v2285
        %2331 = vmatprep.subr.bf16.mxu0 0
        %2332 = vmatpush1.bf16.msra.mxu0 %v2286
        %2333 = vmatprep.subr.bf16.mxu0 0
        %2334 = vmatpush1.bf16.msra.mxu0 %v2287
        %2335 = vmatprep.subr.bf16.mxu0 0
        %2336 = vmatpush1.bf16.msra.mxu0 %v2288
        %2337 = vmatprep.mubr.bf16.mxu0 %v2169
        %2338 = vmatmul.mubr.bf16.gmra.mrb[0].mxu0 %v2168
        %v2339 = vpop.f32.mrb[0].mxu0
        %v2340 = vadd.f32 %v2207, %v2339
        %v2341 = vpop.f32.mrb[0].mxu0
        %v2342 = vpop.f32.mrb[0].mxu0
        %v2343 = vpop.f32.mrb[0].mxu0
        %2344 = vdwg.mxu0
        %v2345 = vadd.f32 %v2015, %v2340
        %v2346 = vld [vmem:[%s931] sm:$0x1]
        %v2347 = vld [vmem:[%s939] sm:$0x1]
        %2348 = vadd.xlane.f32.xlu0 %v2345
        %v2349 = vpop.xlane.xlu0 %2348
        %v2350 = vmul.f32 %v2349, %v1992
        %v2351 = vsub.f32 %v2345, %v2350
        %v2352 = vmul.f32 %v2351, %v2351
        %2353 = vadd.xlane.f32.xlu0 %v2352
        %v2354 = vpop.xlane.xlu0 %2353
        %v2355 = vmul.f32 %v2354, %v1992
        %v2356 = vadd.f32 %v2355, 1e-05
        %v2357 = vrsqrt.pop %v2356
        %v2358 = vmul.f32 %v2351, %v2357
        %v2360 = vlaneseq
        %v2361 = vshrl.u32 %v2360, 7
        %v2362 = vsub.s32 0, %v2361
        %v2363 = vrot.slane %v2346, %v2362
        %v2365 = vmul.f32 %v2358, %v2363
        %v2367 = vlaneseq
        %v2368 = vshrl.u32 %v2367, 7
        %v2369 = vsub.s32 0, %v2368
        %v2370 = vrot.slane %v2347, %v2369
        %v2372 = vadd.f32 %v2365, %v2370
        %2373 = vst [vmem:[#allocation2] sm:$0xff] %v2372
        %p2374 = scmp.eq.s32.totalorder %s59, 1
        // Predicated region
        $region161: #{tpu_custom_call.1} parent=87 // pred_check
          %p2375 = pneg %p2374
        $region162: #{tpu_custom_call.1} parent=87 // pred_check_branch
          %2377 = sbr.rel (%p2375) target = $region164
        $region163: #{tpu_custom_call.1} parent=87 // pred_region
          %v2378 = vpack.c.bf16 %v2372, %v2372
          %v2379 = vld [vmem:[#allocation28] sm:$0xf]
          %v2380 = vld [vmem:[#allocation28 + $0x4] sm:$0xf]
          %v2381 = vld [vmem:[#allocation28 + $0x8] sm:$0xf]
          %v2382 = vld [vmem:[#allocation28 + $0xc] sm:$0xf]
          %v2383 = vld [vmem:[#allocation28 + $0x10] sm:$0xf]
          %v2384 = vld [vmem:[#allocation28 + $0x14] sm:$0xf]
          %v2385 = vld [vmem:[#allocation28 + $0x18] sm:$0xf]
          %v2386 = vld [vmem:[#allocation28 + $0x1c] sm:$0xf]
          %v2387 = vld [vmem:[#allocation28 + $0x20] sm:$0xf]
          %v2388 = vld [vmem:[#allocation28 + $0x24] sm:$0xf]
          %v2389 = vld [vmem:[#allocation28 + $0x28] sm:$0xf]
          %v2390 = vld [vmem:[#allocation28 + $0x2c] sm:$0xf]
          %v2391 = vld [vmem:[#allocation28 + $0x30] sm:$0xf]
          %v2392 = vld [vmem:[#allocation28 + $0x34] sm:$0xf]
          %v2393 = vld [vmem:[#allocation28 + $0x38] sm:$0xf]
          %v2394 = vld [vmem:[#allocation28 + $0x3c] sm:$0xf]
          %v2395 = vld [vmem:[#allocation30] sm:$0x1]
          %v2397 = vlaneseq
          %v2398 = vshrl.u32 %v2397, 7
          %v2399 = vsub.s32 0, %v2398
          %v2400 = vrot.slane %v2395, %v2399
          %v2418 = vunpack.c.l.b16 %v2379
          %v2419 = vunpack.c.l.b16 %v2380
          %v2420 = vunpack.c.l.b16 %v2381
          %v2421 = vunpack.c.l.b16 %v2382
          %v2422 = vunpack.c.l.b16 %v2383
          %v2423 = vunpack.c.l.b16 %v2384
          %v2424 = vunpack.c.l.b16 %v2385
          %v2425 = vunpack.c.l.b16 %v2386
          %v2426 = vunpack.c.l.b16 %v2387
          %v2427 = vunpack.c.l.b16 %v2388
          %v2428 = vunpack.c.l.b16 %v2389
          %v2429 = vunpack.c.l.b16 %v2390
          %v2430 = vunpack.c.l.b16 %v2391
          %v2431 = vunpack.c.l.b16 %v2392
          %v2432 = vunpack.c.l.b16 %v2393
          %v2433 = vunpack.c.l.b16 %v2394
          %v2434 = vpack.c.b16 %v2419, %v2418
          %v2435 = vpack.c.b16 %v2421, %v2420
          %v2436 = vpack.c.b16 %v2423, %v2422
          %v2437 = vpack.c.b16 %v2425, %v2424
          %v2438 = vpack.c.b16 %v2427, %v2426
          %v2439 = vpack.c.b16 %v2429, %v2428
          %v2440 = vpack.c.b16 %v2431, %v2430
          %v2441 = vpack.c.b16 %v2433, %v2432
          %2450 = vmatprep.subr.bf16.mxu0 0
          %2451 = vmatpush1.bf16.msra.mxu0 %v2434
          %2452 = vmatprep.subr.bf16.mxu0 0
          %2453 = vmatpush1.bf16.msra.mxu0 %v2435
          %2454 = vmatprep.subr.bf16.mxu0 0
          %2455 = vmatpush1.bf16.msra.mxu0 %v2436
          %2456 = vmatprep.subr.bf16.mxu0 0
          %2457 = vmatpush1.bf16.msra.mxu0 %v2437
          %2458 = vmatprep.subr.bf16.mxu0 0
          %2459 = vmatpush1.bf16.msra.mxu0 %v2438
          %2460 = vmatprep.subr.bf16.mxu0 0
          %2461 = vmatpush1.bf16.msra.mxu0 %v2439
          %2462 = vmatprep.subr.bf16.mxu0 0
          %2463 = vmatpush1.bf16.msra.mxu0 %v2440
          %2464 = vmatprep.subr.bf16.mxu0 0
          %2465 = vmatpush1.bf16.msra.mxu0 %v2441
          %2466 = vmatprep.subr.bf16.mxu0 0
          %2467 = vmatpush1.bf16.msra.mxu0 0
          %2468 = vmatprep.subr.bf16.mxu0 0
          %2469 = vmatpush1.bf16.msra.mxu0 0
          %2470 = vmatprep.subr.bf16.mxu0 0
          %2471 = vmatpush1.bf16.msra.mxu0 0
          %2472 = vmatprep.subr.bf16.mxu0 0
          %2473 = vmatpush1.bf16.msra.mxu0 0
          %2474 = vmatprep.subr.bf16.mxu0 0
          %2475 = vmatpush1.bf16.msra.mxu0 0
          %2476 = vmatprep.subr.bf16.mxu0 0
          %2477 = vmatpush1.bf16.msra.mxu0 0
          %2478 = vmatprep.subr.bf16.mxu0 0
          %2479 = vmatpush1.bf16.msra.mxu0 0
          %2480 = vmatprep.subr.bf16.mxu0 0
          %2481 = vmatpush1.bf16.msra.mxu0 0
          %2482 = vmatprep.mubr.bf16.mxu0 0
          %2483 = vmatmul.mubr.bf16.gmra.mrb[0].mxu0 %v2378
          %v2484 = vpop.f32.mrb[0].mxu0
          %v2485 = vadd.f32 %v2400, %v2484
          %v2486 = vpop.f32.mrb[0].mxu0
          %v2487 = vpop.f32.mrb[0].mxu0
          %v2488 = vpop.f32.mrb[0].mxu0
          %2489 = vdwg.mxu0
          %2490 = vst [vmem:[%s1051] sm:$0xff] %v2485
        $region164: #{tpu_custom_call.1} parent=87 // pred_fallthru
          _
        %s2491 = sand.u32 %s496, 1
        %s2492 = scalar_lea.sflag [#allocation6], %s2491
        %s2493 = sand.u32 %s496, 1
        %s2494 = smul.addr %s2493, 8
        %s2495 = scalar_lea.vmem [#allocation31], %s2494
        // Predicated region
        $region165: #{tpu_custom_call.1} parent=87 // pred_check
          %p2496 = pneg %p506
        $region166: #{tpu_custom_call.1} parent=87 // pred_check_branch
          %2498 = sbr.rel (%p2496) target = $region168
        $region167: #{tpu_custom_call.1} parent=87 // pred_region
          %s2500 = ssub.s32 128, 128
          %2501 = vsyncadd %s2492, %s2500
          %s2502 = smul.addr %s58, 128
          %s2503 = scalar_lea.hbm %s17, %s2502
          %s2505 = sshll.u32 %s2495, 4
          %s2506 = int_to_ptr.vmem [resolvable:$true] %s2505
          %2508 = dma.vmem_to_hbm [thread:$0]  %s2506, 128, %s2503, %s2492
        $region168: #{tpu_custom_call.1} parent=87 // pred_fallthru
          _
      $region88: #{tpu_custom_call.1} parent=5 // pred_fallthru
        _
      %p2509 = scmp.le.s32.totalorder 2, %s49
      // Predicated region
      $region169: #{tpu_custom_call.1} parent=5 // pred_check
        %p2510 = pneg %p2509
      $region170: #{tpu_custom_call.1} parent=5 // pred_check_branch
        %2512 = sbr.rel (%p2510) target = $region172
      $region171: #{tpu_custom_call.1} parent=5 // pred_region
        %s2513 = ssub.s32 %s49, 2
        // Predicated region
        $region173: #{tpu_custom_call.1} parent=171 // pred_check
          %p2514 = pneg %p512
        $region174: #{tpu_custom_call.1} parent=171 // pred_check_branch
          %2516 = sbr.rel (%p2514) target = $region176
        $region175: #{tpu_custom_call.1} parent=171 // pred_region
          %s2517 = sand.u32 %s497, 1
          %s2518 = scalar_lea.sflag [#allocation6], %s2517
          %s2519 = sand.u32 %s497, 1
          %s2520 = smul.addr %s2519, 8
          %s2521 = scalar_lea.vmem [#allocation31], %s2520
          %2522 = dma.done %s2518, 128
        $region176: #{tpu_custom_call.1} parent=171 // pred_fallthru
          _
      $region172: #{tpu_custom_call.1} parent=5 // pred_fallthru
        _
    $region6: #{tpu_custom_call.1} parent=1 // loop_footer
      %s53 = sadd.s32 1, %s49
    $region7: #{tpu_custom_call.1} parent=1 // loop_footer_branch
      %48 = sbr.rel target = $region3
    $region8: #{tpu_custom_call.1} parent=1 // loop_exit
      _
    %2523 = vsyncpa [#allocation5], 1
    %s2524 = scalar_lea.sflag [#allocation5], 1
    %2525 = vsyncpa %s2524, 1
    %2526 = vsyncpa [#allocation8], 1
    %2527 = vsyncpa [#allocation11], 1
    %s2528 = scalar_lea.sflag [#allocation11], 1
    %2529 = vsyncpa %s2528, 1
    %2530 = vsyncpa [#allocation14], 1
    %s2531 = scalar_lea.sflag [#allocation14], 1
    %2532 = vsyncpa %s2531, 1
    %2533 = vsyncpa [#allocation17], 1
    %s2534 = scalar_lea.sflag [#allocation17], 1
    %2535 = vsyncpa %s2534, 1
    %2536 = vsyncpa [#allocation20], 1
    %s2537 = scalar_lea.sflag [#allocation20], 1
    %2538 = vsyncpa %s2537, 1
    %2539 = vsyncpa [#allocation23], 1
    %s2540 = scalar_lea.sflag [#allocation23], 1
    %2541 = vsyncpa %s2540, 1
    %2542 = vsyncpa [#allocation26], 1
    %s2543 = scalar_lea.sflag [#allocation26], 1
    %2544 = vsyncpa %s2543, 1
    %2545 = vsyncpa [#allocation29], 1
    %2546 = vsyncpa [#allocation6], 1
    %s2547 = scalar_lea.sflag [#allocation6], 1
    %2548 = vsyncpa %s2547, 1

</llo_original>
